<compile_context>
chip_gen: v7x
topology: tpu7x:2x2x1
jax: 0.10.0
libtpu: 0.0.40
codegen_flags: <defaults>
</compile_context>

<pallas_src>
import math

import jax
import jax.numpy as jnp
from jax.experimental import pallas as pl
from jax.experimental.pallas import tpu as pltpu

GRID = 40            # target render volume is (40, 40, 40, 1) per the reference module
_PLANE_COLS = 200    # 40*40 = 1600 = 8 * 200  -> each depth plane is a lane-dense (8, 200) tile


# ----------------------------------------------------------------------------
# VoxelGrid "module": deterministic parameter construction (matches __init__).
# Layout cost (flatten + transpose of the static index tensor) is paid once here.
# ----------------------------------------------------------------------------
def _indices_from_shape(shape):
    H, W, D = shape
    ii, jj, kk = jnp.meshgrid(
        jnp.arange(H), jnp.arange(W), jnp.arange(D), indexing="ij"
    )
    return jnp.stack([ii, jj, kk], axis=-1).astype(jnp.float32)  # (H, W, D, 3)


def make_voxel_grid(shape):
    H, W, D = shape
    n = H * W * D
    shape_arr = jnp.array([H, W, D], jnp.float32)
    scaled = _indices_from_shape(shape) - shape_arr / 2.0            # (H, W, D, 3)
    scaled_t = jnp.transpose(scaled.reshape(n, 3), (1, 0))           # (3, N), coords on sublanes
    absorbance = jnp.ones((H, W, D, 1), jnp.float32)                 # nn.Parameter init
    att_logit = math.log(0.02 / (1.0 - 0.02))                        # torch.logit(0.02)
    attenuation = jnp.full((H, W, D, 1), att_logit, jnp.float32)
    return {
        "shape": (H, W, D),
        "scaled_indices_t": scaled_t,                                # (3, N)
        "absorbance_flat": absorbance.reshape(1, n),                 # (1, N)
        "attenuation_flat": attenuation.reshape(1, n),               # (1, N)
    }


# ----------------------------------------------------------------------------
# Kernel 1: index transform + per-voxel sigmoid prep.
#   flat_idx = i2*1600 + i0*40 + i1   (D, H, W order -> march axis is leading)
#   at  = sigmoid(absorbance) * sigmoid(attenuation)
#   omt = 1 - sigmoid(attenuation)
# All outputs are lane-dense (1, N) and written with single unmasked full stores.
# The 3x3 rotation stays on the VPU as broadcast-multiplies (no MXU).
# ----------------------------------------------------------------------------
def _transform_kernel(r_ref, off_ref, s_ref, abs_ref, att_ref,
                      idx_ref, at_ref, omt_ref):
    s0 = s_ref[0:1, :]
    s1 = s_ref[1:2, :]
    s2 = s_ref[2:3, :]

    def rotated(j):
        v = s0 * r_ref[0, j] + s1 * r_ref[1, j] + s2 * r_ref[2, j] + off_ref[j]
        v = jnp.clip(v, 0.0, float(GRID - 1))
        return v.astype(jnp.int32)     # trunc toward 0 == .long() (values are >= 0)

    i0 = rotated(0)
    i1 = rotated(1)
    i2 = rotated(2)
    idx_ref[...] = i2 * (GRID * GRID) + i0 * GRID + i1          # (1, N) int32

    a = jax.nn.sigmoid(abs_ref[...])
    t = jax.nn.sigmoid(att_ref[...])
    at_ref[...] = a * t                                         # (1, N)
    omt_ref[...] = 1.0 - t                                      # (1, N)


def transform_and_prep(camera_r, offset, scaled_t, abs_flat, att_flat):
    n = scaled_t.shape[1]
    return pl.pallas_call(
        _transform_kernel,
        out_shape=(
            jax.ShapeDtypeStruct((1, n), jnp.int32),    # flat indices (D,H,W order)
            jax.ShapeDtypeStruct((1, n), jnp.float32),  # a * t
            jax.ShapeDtypeStruct((1, n), jnp.float32),  # 1 - t
        ),
        in_specs=[
            pl.BlockSpec(memory_space=pltpu.MemorySpace.SMEM),  # camera_R (3, 3)
            pl.BlockSpec(memory_space=pltpu.MemorySpace.SMEM),  # offset   (3,)
            pl.BlockSpec(memory_space=pltpu.MemorySpace.VMEM),  # scaled_t (3, N)
            pl.BlockSpec(memory_space=pltpu.MemorySpace.VMEM),  # absorbance (1, N)
            pl.BlockSpec(memory_space=pltpu.MemorySpace.VMEM),  # attenuation (1, N)
        ],
        out_specs=(
            pl.BlockSpec(memory_space=pltpu.MemorySpace.VMEM),
            pl.BlockSpec(memory_space=pltpu.MemorySpace.VMEM),
            pl.BlockSpec(memory_space=pltpu.MemorySpace.VMEM),
        ),
    )(camera_r, offset, scaled_t, abs_flat, att_flat)


# ----------------------------------------------------------------------------
# Kernel 2: ray march.  Input grids: (2, D=40, 8, 200) f32 where
#   grids[0] = a*t volume, grids[1] = (1 - t) volume, both in (D, H, W) order
#   with each depth plane viewed lane-dense as (8, 200).
# The 40-step march is fully unrolled; the body is pure VPU mul/add on 2-vreg planes.
# Output: lane-dense (8, 200); reshaped to (40, 40) by the wrapper.
# ----------------------------------------------------------------------------
def _ray_march_kernel(grids_ref, out_ref):
    d_steps = grids_ref.shape[1]
    trans = jnp.ones(out_ref.shape, jnp.float32)
    acc = jnp.zeros(out_ref.shape, jnp.float32)
    # static trip count -> full unroll; loads stay inside the loop (2 planes / step).
    for d in range(d_steps):
        at = grids_ref[0, d]       # (8, 200)
        omt = grids_ref[1, d]      # (8, 200)
        acc = acc + at * trans
        trans = trans * omt
    out_ref[...] = acc


def ray_march(grids):
    _, _, rows, cols = grids.shape
    return pl.pallas_call(
        _ray_march_kernel,
        out_shape=jax.ShapeDtypeStruct((rows, cols), jnp.float32),
        in_specs=[pl.BlockSpec(memory_space=pltpu.MemorySpace.VMEM)],
        out_specs=pl.BlockSpec(memory_space=pltpu.MemorySpace.VMEM),
    )(grids)


# ----------------------------------------------------------------------------
# DifferentiableRenderer.forward
# ----------------------------------------------------------------------------
def differentiable_renderer_forward(camera_r, volume):
    H, W, D = volume["shape"]
    shape_arr = jnp.array([H, W, D], jnp.float32)
    offset = shape_arr / 2.0 + (GRID - shape_arr) / 2.0              # (3,)

    idx_flat, at_flat, omt_flat = transform_and_prep(
        camera_r.astype(jnp.float32),
        offset.astype(jnp.float32),
        volume["scaled_indices_t"],
        volume["absorbance_flat"],
        volume["attenuation_flat"],
    )

    # Single stacked 1-D scatter (data-dependent; left to XLA — see TODO at top).
    # Background: a*t = 0 and (1 - t) = 1, i.e. sigmoid(logit(0)) without materializing -inf.
    vals2 = jnp.concatenate([at_flat, omt_flat], axis=0)             # (2, N)
    init = jnp.concatenate(
        [jnp.zeros((1, GRID ** 3), jnp.float32),
         jnp.ones((1, GRID ** 3), jnp.float32)], axis=0)             # (2, 64000)
    grids = init.at[:, idx_flat[0]].set(vals2)                       # (2, 64000)
    grids = grids.reshape(2, GRID, (GRID * GRID) // _PLANE_COLS, _PLANE_COLS)  # (2,40,8,200)

    render = ray_march(grids)                                        # (8, 200)
    render = render.reshape(GRID, GRID)                              # (40, 40)
    return render[None, :, :, None]                                  # (1, 40, 40, 1)


if __name__ == "__main__":
    key = jax.random.PRNGKey(0)

    # deterministic camera rotation (orthonormalized random matrix)
    q, _ = jnp.linalg.qr(jax.random.normal(key, (3, 3), jnp.float32))
    camera_r = q.astype(jnp.float32)

    # small voxel grid consistent with the module (H, W, D) < 40
    volume = make_voxel_grid((16, 16, 16))

    out = jax.jit(differentiable_renderer_forward)(camera_r, volume)
    out = jax.block_until_ready(out)

    assert out.shape == (1, GRID, GRID, 1), out.shape
    assert bool(jnp.all(jnp.isfinite(out)))
    print("KERNEL_OK")
</pallas_src>

<mosaic_0001>
module attributes {stable_mosaic.version = 11 : i64} {
  func.func @_transform_kernel(%arg0: memref<3x3xf32, #tpu.memory_space<smem>>, %arg1: memref<3xf32, #tpu.memory_space<smem>>, %arg2: memref<3x4096xf32, #tpu.memory_space<vmem>>, %arg3: memref<1x4096xf32, #tpu.memory_space<vmem>>, %arg4: memref<1x4096xf32, #tpu.memory_space<vmem>>, %arg5: memref<1x4096xi32, #tpu.memory_space<vmem>>, %arg6: memref<1x4096xf32, #tpu.memory_space<vmem>>, %arg7: memref<1x4096xf32, #tpu.memory_space<vmem>>) attributes {dimension_semantics = [], scalar_prefetch = 0 : i64, scratch_operands = 0 : i64, tpu.core_type = #tpu.core_type<tc>} {
    %c0 = arith.constant 0 : index
    %c0_0 = arith.constant 0 : index
    %0 = vector.load %arg2[%c0, %c0_0] : memref<3x4096xf32, #tpu.memory_space<vmem>>, vector<1x4096xf32>
    %c1 = arith.constant 1 : index
    %c0_1 = arith.constant 0 : index
    %1 = vector.load %arg2[%c1, %c0_1] : memref<3x4096xf32, #tpu.memory_space<vmem>>, vector<1x4096xf32>
    %c2 = arith.constant 2 : index
    %c0_2 = arith.constant 0 : index
    %2 = vector.load %arg2[%c2, %c0_2] : memref<3x4096xf32, #tpu.memory_space<vmem>>, vector<1x4096xf32>
    %c0_3 = arith.constant 0 : index
    %c0_4 = arith.constant 0 : index
    %3 = memref.load %arg0[%c0_3, %c0_4] : memref<3x3xf32, #tpu.memory_space<smem>>
    %4 = vector.broadcast %3 : f32 to vector<1x4096xf32>
    %5 = arith.mulf %0, %4 : vector<1x4096xf32>
    %c1_5 = arith.constant 1 : index
    %c0_6 = arith.constant 0 : index
    %6 = memref.load %arg0[%c1_5, %c0_6] : memref<3x3xf32, #tpu.memory_space<smem>>
    %7 = vector.broadcast %6 : f32 to vector<1x4096xf32>
    %8 = arith.mulf %1, %7 : vector<1x4096xf32>
    %9 = arith.addf %5, %8 : vector<1x4096xf32>
    %c2_7 = arith.constant 2 : index
    %c0_8 = arith.constant 0 : index
    %10 = memref.load %arg0[%c2_7, %c0_8] : memref<3x3xf32, #tpu.memory_space<smem>>
    %11 = vector.broadcast %10 : f32 to vector<1x4096xf32>
    %12 = arith.mulf %2, %11 : vector<1x4096xf32>
    %13 = arith.addf %9, %12 : vector<1x4096xf32>
    %c0_9 = arith.constant 0 : index
    %14 = memref.load %arg1[%c0_9] : memref<3xf32, #tpu.memory_space<smem>>
    %15 = vector.broadcast %14 : f32 to vector<1x4096xf32>
    %16 = arith.addf %13, %15 : vector<1x4096xf32>
    %cst = arith.constant 0.000000e+00 : f32
    %cst_10 = arith.constant 3.900000e+01 : f32
    %17 = vector.broadcast %cst : f32 to vector<1x4096xf32>
    %18 = arith.maximumf %17, %16 : vector<1x4096xf32>
    %19 = vector.broadcast %cst_10 : f32 to vector<1x4096xf32>
    %20 = arith.minimumf %19, %18 : vector<1x4096xf32>
    %21 = arith.fptosi %20 : vector<1x4096xf32> to vector<1x4096xi32>
    %c0_11 = arith.constant 0 : index
    %c1_12 = arith.constant 1 : index
    %22 = memref.load %arg0[%c0_11, %c1_12] : memref<3x3xf32, #tpu.memory_space<smem>>
    %23 = vector.broadcast %22 : f32 to vector<1x4096xf32>
    %24 = arith.mulf %0, %23 : vector<1x4096xf32>
    %c1_13 = arith.constant 1 : index
    %c1_14 = arith.constant 1 : index
    %25 = memref.load %arg0[%c1_13, %c1_14] : memref<3x3xf32, #tpu.memory_space<smem>>
    %26 = vector.broadcast %25 : f32 to vector<1x4096xf32>
    %27 = arith.mulf %1, %26 : vector<1x4096xf32>
    %28 = arith.addf %24, %27 : vector<1x4096xf32>
    %c2_15 = arith.constant 2 : index
    %c1_16 = arith.constant 1 : index
    %29 = memref.load %arg0[%c2_15, %c1_16] : memref<3x3xf32, #tpu.memory_space<smem>>
    %30 = vector.broadcast %29 : f32 to vector<1x4096xf32>
    %31 = arith.mulf %2, %30 : vector<1x4096xf32>
    %32 = arith.addf %28, %31 : vector<1x4096xf32>
    %c1_17 = arith.constant 1 : index
    %33 = memref.load %arg1[%c1_17] : memref<3xf32, #tpu.memory_space<smem>>
    %34 = vector.broadcast %33 : f32 to vector<1x4096xf32>
    %35 = arith.addf %32, %34 : vector<1x4096xf32>
    %cst_18 = arith.constant 0.000000e+00 : f32
    %cst_19 = arith.constant 3.900000e+01 : f32
    %36 = vector.broadcast %cst_18 : f32 to vector<1x4096xf32>
    %37 = arith.maximumf %36, %35 : vector<1x4096xf32>
    %38 = vector.broadcast %cst_19 : f32 to vector<1x4096xf32>
    %39 = arith.minimumf %38, %37 : vector<1x4096xf32>
    %40 = arith.fptosi %39 : vector<1x4096xf32> to vector<1x4096xi32>
    %c0_20 = arith.constant 0 : index
    %c2_21 = arith.constant 2 : index
    %41 = memref.load %arg0[%c0_20, %c2_21] : memref<3x3xf32, #tpu.memory_space<smem>>
    %42 = vector.broadcast %41 : f32 to vector<1x4096xf32>
    %43 = arith.mulf %0, %42 : vector<1x4096xf32>
    %c1_22 = arith.constant 1 : index
    %c2_23 = arith.constant 2 : index
    %44 = memref.load %arg0[%c1_22, %c2_23] : memref<3x3xf32, #tpu.memory_space<smem>>
    %45 = vector.broadcast %44 : f32 to vector<1x4096xf32>
    %46 = arith.mulf %1, %45 : vector<1x4096xf32>
    %47 = arith.addf %43, %46 : vector<1x4096xf32>
    %c2_24 = arith.constant 2 : index
    %c2_25 = arith.constant 2 : index
    %48 = memref.load %arg0[%c2_24, %c2_25] : memref<3x3xf32, #tpu.memory_space<smem>>
    %49 = vector.broadcast %48 : f32 to vector<1x4096xf32>
    %50 = arith.mulf %2, %49 : vector<1x4096xf32>
    %51 = arith.addf %47, %50 : vector<1x4096xf32>
    %c2_26 = arith.constant 2 : index
    %52 = memref.load %arg1[%c2_26] : memref<3xf32, #tpu.memory_space<smem>>
    %53 = vector.broadcast %52 : f32 to vector<1x4096xf32>
    %54 = arith.addf %51, %53 : vector<1x4096xf32>
    %cst_27 = arith.constant 0.000000e+00 : f32
    %cst_28 = arith.constant 3.900000e+01 : f32
    %55 = vector.broadcast %cst_27 : f32 to vector<1x4096xf32>
    %56 = arith.maximumf %55, %54 : vector<1x4096xf32>
    %57 = vector.broadcast %cst_28 : f32 to vector<1x4096xf32>
    %58 = arith.minimumf %57, %56 : vector<1x4096xf32>
    %59 = arith.fptosi %58 : vector<1x4096xf32> to vector<1x4096xi32>
    %c1600_i32 = arith.constant 1600 : i32
    %60 = vector.broadcast %c1600_i32 : i32 to vector<1x4096xi32>
    %61 = arith.muli %59, %60 : vector<1x4096xi32>
    %c40_i32 = arith.constant 40 : i32
    %62 = vector.broadcast %c40_i32 : i32 to vector<1x4096xi32>
    %63 = arith.muli %21, %62 : vector<1x4096xi32>
    %64 = arith.addi %61, %63 : vector<1x4096xi32>
    %65 = arith.addi %64, %40 : vector<1x4096xi32>
    %c0_29 = arith.constant 0 : index
    %c0_30 = arith.constant 0 : index
    %66 = vector.load %arg5[%c0_29, %c0_30] : memref<1x4096xi32, #tpu.memory_space<vmem>>, vector<1x4096xi32>
    tpu.vector_store %arg5[%c0_29, %c0_30], %65 {strides = array<i32>} : memref<1x4096xi32, #tpu.memory_space<vmem>>, vector<1x4096xi32>,
    %c0_31 = arith.constant 0 : index
    %c0_32 = arith.constant 0 : index
    %67 = vector.load %arg3[%c0_31, %c0_32] : memref<1x4096xf32, #tpu.memory_space<vmem>>, vector<1x4096xf32>
    %68 = arith.negf %67 : vector<1x4096xf32>
    %69 = math.exp %68 : vector<1x4096xf32>
    %cst_33 = arith.constant 1.000000e+00 : f32
    %70 = vector.broadcast %cst_33 : f32 to vector<1x4096xf32>
    %71 = arith.addf %70, %69 : vector<1x4096xf32>
    %72 = arith.divf %70, %71 : vector<1x4096xf32>
    %c0_34 = arith.constant 0 : index
    %c0_35 = arith.constant 0 : index
    %73 = vector.load %arg4[%c0_34, %c0_35] : memref<1x4096xf32, #tpu.memory_space<vmem>>, vector<1x4096xf32>
    %74 = arith.negf %73 : vector<1x4096xf32>
    %75 = math.exp %74 : vector<1x4096xf32>
    %cst_36 = arith.constant 1.000000e+00 : f32
    %76 = vector.broadcast %cst_36 : f32 to vector<1x4096xf32>
    %77 = arith.addf %76, %75 : vector<1x4096xf32>
    %78 = arith.divf %76, %77 : vector<1x4096xf32>
    %79 = arith.mulf %72, %78 : vector<1x4096xf32>
    %c0_37 = arith.constant 0 : index
    %c0_38 = arith.constant 0 : index
    %80 = vector.load %arg6[%c0_37, %c0_38] : memref<1x4096xf32, #tpu.memory_space<vmem>>, vector<1x4096xf32>
    tpu.vector_store %arg6[%c0_37, %c0_38], %79 {strides = array<i32>} : memref<1x4096xf32, #tpu.memory_space<vmem>>, vector<1x4096xf32>,
    %cst_39 = arith.constant 1.000000e+00 : f32
    %81 = vector.broadcast %cst_39 : f32 to vector<1x4096xf32>
    %82 = arith.subf %81, %78 : vector<1x4096xf32>
    %c0_40 = arith.constant 0 : index
    %c0_41 = arith.constant 0 : index
    %83 = vector.load %arg7[%c0_40, %c0_41] : memref<1x4096xf32, #tpu.memory_space<vmem>>, vector<1x4096xf32>
    tpu.vector_store %arg7[%c0_40, %c0_41], %82 {strides = array<i32>} : memref<1x4096xf32, #tpu.memory_space<vmem>>, vector<1x4096xf32>,
    return
  }
}

module attributes {stable_mosaic.version = 11 : i64} {
  func.func @_ray_march_kernel(%arg0: memref<2x40x8x200xf32, #tpu.memory_space<vmem>>, %arg1: memref<8x200xf32, #tpu.memory_space<vmem>>) attributes {dimension_semantics = [], scalar_prefetch = 0 : i64, scratch_operands = 0 : i64, tpu.core_type = #tpu.core_type<tc>} {
    %cst = arith.constant 1.000000e+00 : f32
    %0 = vector.broadcast %cst : f32 to vector<8x200xf32>
    %cst_0 = arith.constant 0.000000e+00 : f32
    %1 = vector.broadcast %cst_0 : f32 to vector<8x200xf32>
    %c0 = arith.constant 0 : index
    %c0_1 = arith.constant 0 : index
    %c0_2 = arith.constant 0 : index
    %c0_3 = arith.constant 0 : index
    %2 = vector.load %arg0[%c0, %c0_1, %c0_2, %c0_3] : memref<2x40x8x200xf32, #tpu.memory_space<vmem>>, vector<1x1x8x200xf32>
    %3 = vector.shape_cast %2 : vector<1x1x8x200xf32> to vector<8x200xf32>
    %c1 = arith.constant 1 : index
    %c0_4 = arith.constant 0 : index
    %c0_5 = arith.constant 0 : index
    %c0_6 = arith.constant 0 : index
    %4 = vector.load %arg0[%c1, %c0_4, %c0_5, %c0_6] : memref<2x40x8x200xf32, #tpu.memory_space<vmem>>, vector<1x1x8x200xf32>
    %5 = vector.shape_cast %4 : vector<1x1x8x200xf32> to vector<8x200xf32>
    %6 = arith.mulf %3, %0 : vector<8x200xf32>
    %7 = arith.addf %1, %6 : vector<8x200xf32>
    %8 = arith.mulf %0, %5 : vector<8x200xf32>
    %c0_7 = arith.constant 0 : index
    %c1_8 = arith.constant 1 : index
    %c0_9 = arith.constant 0 : index
    %c0_10 = arith.constant 0 : index
    %9 = vector.load %arg0[%c0_7, %c1_8, %c0_9, %c0_10] : memref<2x40x8x200xf32, #tpu.memory_space<vmem>>, vector<1x1x8x200xf32>
    %10 = vector.shape_cast %9 : vector<1x1x8x200xf32> to vector<8x200xf32>
    %c1_11 = arith.constant 1 : index
    %c1_12 = arith.constant 1 : index
    %c0_13 = arith.constant 0 : index
    %c0_14 = arith.constant 0 : index
    %11 = vector.load %arg0[%c1_11, %c1_12, %c0_13, %c0_14] : memref<2x40x8x200xf32, #tpu.memory_space<vmem>>, vector<1x1x8x200xf32>
    %12 = vector.shape_cast %11 : vector<1x1x8x200xf32> to vector<8x200xf32>
    %13 = arith.mulf %10, %8 : vector<8x200xf32>
    %14 = arith.addf %7, %13 : vector<8x200xf32>
    %15 = arith.mulf %8, %12 : vector<8x200xf32>
    %c0_15 = arith.constant 0 : index
    %c2 = arith.constant 2 : index
    %c0_16 = arith.constant 0 : index
    %c0_17 = arith.constant 0 : index
    %16 = vector.load %arg0[%c0_15, %c2, %c0_16, %c0_17] : memref<2x40x8x200xf32, #tpu.memory_space<vmem>>, vector<1x1x8x200xf32>
    %17 = vector.shape_cast %16 : vector<1x1x8x200xf32> to vector<8x200xf32>
    %c1_18 = arith.constant 1 : index
    %c2_19 = arith.constant 2 : index
    %c0_20 = arith.constant 0 : index
    %c0_21 = arith.constant 0 : index
    %18 = vector.load %arg0[%c1_18, %c2_19, %c0_20, %c0_21] : memref<2x40x8x200xf32, #tpu.memory_space<vmem>>, vector<1x1x8x200xf32>
    %19 = vector.shape_cast %18 : vector<1x1x8x200xf32> to vector<8x200xf32>
    %20 = arith.mulf %17, %15 : vector<8x200xf32>
    %21 = arith.addf %14, %20 : vector<8x200xf32>
    %22 = arith.mulf %15, %19 : vector<8x200xf32>
    %c0_22 = arith.constant 0 : index
    %c3 = arith.constant 3 : index
    %c0_23 = arith.constant 0 : index
    %c0_24 = arith.constant 0 : index
    %23 = vector.load %arg0[%c0_22, %c3, %c0_23, %c0_24] : memref<2x40x8x200xf32, #tpu.memory_space<vmem>>, vector<1x1x8x200xf32>
    %24 = vector.shape_cast %23 : vector<1x1x8x200xf32> to vector<8x200xf32>
    %c1_25 = arith.constant 1 : index
    %c3_26 = arith.constant 3 : index
    %c0_27 = arith.constant 0 : index
    %c0_28 = arith.constant 0 : index
    %25 = vector.load %arg0[%c1_25, %c3_26, %c0_27, %c0_28] : memref<2x40x8x200xf32, #tpu.memory_space<vmem>>, vector<1x1x8x200xf32>
    %26 = vector.shape_cast %25 : vector<1x1x8x200xf32> to vector<8x200xf32>
    %27 = arith.mulf %24, %22 : vector<8x200xf32>
    %28 = arith.addf %21, %27 : vector<8x200xf32>
    %29 = arith.mulf %22, %26 : vector<8x200xf32>
    %c0_29 = arith.constant 0 : index
    %c4 = arith.constant 4 : index
    %c0_30 = arith.constant 0 : index
    %c0_31 = arith.constant 0 : index
    %30 = vector.load %arg0[%c0_29, %c4, %c0_30, %c0_31] : memref<2x40x8x200xf32, #tpu.memory_space<vmem>>, vector<1x1x8x200xf32>
    %31 = vector.shape_cast %30 : vector<1x1x8x200xf32> to vector<8x200xf32>
    %c1_32 = arith.constant 1 : index
    %c4_33 = arith.constant 4 : index
    %c0_34 = arith.constant 0 : index
    %c0_35 = arith.constant 0 : index
    %32 = vector.load %arg0[%c1_32, %c4_33, %c0_34, %c0_35] : memref<2x40x8x200xf32, #tpu.memory_space<vmem>>, vector<1x1x8x200xf32>
    %33 = vector.shape_cast %32 : vector<1x1x8x200xf32> to vector<8x200xf32>
    %34 = arith.mulf %31, %29 : vector<8x200xf32>
    %35 = arith.addf %28, %34 : vector<8x200xf32>
    %36 = arith.mulf %29, %33 : vector<8x200xf32>
    %c0_36 = arith.constant 0 : index
    %c5 = arith.constant 5 : index
    %c0_37 = arith.constant 0 : index
    %c0_38 = arith.constant 0 : index
    %37 = vector.load %arg0[%c0_36, %c5, %c0_37, %c0_38] : memref<2x40x8x200xf32, #tpu.memory_space<vmem>>, vector<1x1x8x200xf32>
    %38 = vector.shape_cast %37 : vector<1x1x8x200xf32> to vector<8x200xf32>
    %c1_39 = arith.constant 1 : index
    %c5_40 = arith.constant 5 : index
    %c0_41 = arith.constant 0 : index
    %c0_42 = arith.constant 0 : index
    %39 = vector.load %arg0[%c1_39, %c5_40, %c0_41, %c0_42] : memref<2x40x8x200xf32, #tpu.memory_space<vmem>>, vector<1x1x8x200xf32>
    %40 = vector.shape_cast %39 : vector<1x1x8x200xf32> to vector<8x200xf32>
    %41 = arith.mulf %38, %36 : vector<8x200xf32>
    %42 = arith.addf %35, %41 : vector<8x200xf32>
    %43 = arith.mulf %36, %40 : vector<8x200xf32>
    %c0_43 = arith.constant 0 : index
    %c6 = arith.constant 6 : index
    %c0_44 = arith.constant 0 : index
    %c0_45 = arith.constant 0 : index
    %44 = vector.load %arg0[%c0_43, %c6, %c0_44, %c0_45] : memref<2x40x8x200xf32, #tpu.memory_space<vmem>>, vector<1x1x8x200xf32>
    %45 = vector.shape_cast %44 : vector<1x1x8x200xf32> to vector<8x200xf32>
    %c1_46 = arith.constant 1 : index
    %c6_47 = arith.constant 6 : index
    %c0_48 = arith.constant 0 : index
    %c0_49 = arith.constant 0 : index
    %46 = vector.load %arg0[%c1_46, %c6_47, %c0_48, %c0_49] : memref<2x40x8x200xf32, #tpu.memory_space<vmem>>, vector<1x1x8x200xf32>
    %47 = vector.shape_cast %46 : vector<1x1x8x200xf32> to vector<8x200xf32>
    %48 = arith.mulf %45, %43 : vector<8x200xf32>
    %49 = arith.addf %42, %48 : vector<8x200xf32>
    %50 = arith.mulf %43, %47 : vector<8x200xf32>
    %c0_50 = arith.constant 0 : index
    %c7 = arith.constant 7 : index
    %c0_51 = arith.constant 0 : index
    %c0_52 = arith.constant 0 : index
    %51 = vector.load %arg0[%c0_50, %c7, %c0_51, %c0_52] : memref<2x40x8x200xf32, #tpu.memory_space<vmem>>, vector<1x1x8x200xf32>
    %52 = vector.shape_cast %51 : vector<1x1x8x200xf32> to vector<8x200xf32>
    %c1_53 = arith.constant 1 : index
    %c7_54 = arith.constant 7 : index
    %c0_55 = arith.constant 0 : index
    %c0_56 = arith.constant 0 : index
    %53 = vector.load %arg0[%c1_53, %c7_54, %c0_55, %c0_56] : memref<2x40x8x200xf32, #tpu.memory_space<vmem>>, vector<1x1x8x200xf32>
    %54 = vector.shape_cast %53 : vector<1x1x8x200xf32> to vector<8x200xf32>
    %55 = arith.mulf %52, %50 : vector<8x200xf32>
    %56 = arith.addf %49, %55 : vector<8x200xf32>
    %57 = arith.mulf %50, %54 : vector<8x200xf32>
    %c0_57 = arith.constant 0 : index
    %c8 = arith.constant 8 : index
    %c0_58 = arith.constant 0 : index
    %c0_59 = arith.constant 0 : index
    %58 = vector.load %arg0[%c0_57, %c8, %c0_58, %c0_59] : memref<2x40x8x200xf32, #tpu.memory_space<vmem>>, vector<1x1x8x200xf32>
    %59 = vector.shape_cast %58 : vector<1x1x8x200xf32> to vector<8x200xf32>
    %c1_60 = arith.constant 1 : index
    %c8_61 = arith.constant 8 : index
    %c0_62 = arith.constant 0 : index
    %c0_63 = arith.constant 0 : index
    %60 = vector.load %arg0[%c1_60, %c8_61, %c0_62, %c0_63] : memref<2x40x8x200xf32, #tpu.memory_space<vmem>>, vector<1x1x8x200xf32>
    %61 = vector.shape_cast %60 : vector<1x1x8x200xf32> to vector<8x200xf32>
    %62 = arith.mulf %59, %57 : vector<8x200xf32>
    %63 = arith.addf %56, %62 : vector<8x200xf32>
    %64 = arith.mulf %57, %61 : vector<8x200xf32>
    %c0_64 = arith.constant 0 : index
    %c9 = arith.constant 9 : index
    %c0_65 = arith.constant 0 : index
    %c0_66 = arith.constant 0 : index
    %65 = vector.load %arg0[%c0_64, %c9, %c0_65, %c0_66] : memref<2x40x8x200xf32, #tpu.memory_space<vmem>>, vector<1x1x8x200xf32>
    %66 = vector.shape_cast %65 : vector<1x1x8x200xf32> to vector<8x200xf32>
    %c1_67 = arith.constant 1 : index
    %c9_68 = arith.constant 9 : index
    %c0_69 = arith.constant 0 : index
    %c0_70 = arith.constant 0 : index
    %67 = vector.load %arg0[%c1_67, %c9_68, %c0_69, %c0_70] : memref<2x40x8x200xf32, #tpu.memory_space<vmem>>, vector<1x1x8x200xf32>
    %68 = vector.shape_cast %67 : vector<1x1x8x200xf32> to vector<8x200xf32>
    %69 = arith.mulf %66, %64 : vector<8x200xf32>
    %70 = arith.addf %63, %69 : vector<8x200xf32>
    %71 = arith.mulf %64, %68 : vector<8x200xf32>
    %c0_71 = arith.constant 0 : index
    %c10 = arith.constant 10 : index
    %c0_72 = arith.constant 0 : index
    %c0_73 = arith.constant 0 : index
    %72 = vector.load %arg0[%c0_71, %c10, %c0_72, %c0_73] : memref<2x40x8x200xf32, #tpu.memory_space<vmem>>, vector<1x1x8x200xf32>
    %73 = vector.shape_cast %72 : vector<1x1x8x200xf32> to vector<8x200xf32>
    %c1_74 = arith.constant 1 : index
    %c10_75 = arith.constant 10 : index
    %c0_76 = arith.constant 0 : index
    %c0_77 = arith.constant 0 : index
    %74 = vector.load %arg0[%c1_74, %c10_75, %c0_76, %c0_77] : memref<2x40x8x200xf32, #tpu.memory_space<vmem>>, vector<1x1x8x200xf32>
    %75 = vector.shape_cast %74 : vector<1x1x8x200xf32> to vector<8x200xf32>
    %76 = arith.mulf %73, %71 : vector<8x200xf32>
    %77 = arith.addf %70, %76 : vector<8x200xf32>
    %78 = arith.mulf %71, %75 : vector<8x200xf32>
    %c0_78 = arith.constant 0 : index
    %c11 = arith.constant 11 : index
    %c0_79 = arith.constant 0 : index
    %c0_80 = arith.constant 0 : index
    %79 = vector.load %arg0[%c0_78, %c11, %c0_79, %c0_80] : memref<2x40x8x200xf32, #tpu.memory_space<vmem>>, vector<1x1x8x200xf32>
    %80 = vector.shape_cast %79 : vector<1x1x8x200xf32> to vector<8x200xf32>
    %c1_81 = arith.constant 1 : index
    %c11_82 = arith.constant 11 : index
    %c0_83 = arith.constant 0 : index
    %c0_84 = arith.constant 0 : index
    %81 = vector.load %arg0[%c1_81, %c11_82, %c0_83, %c0_84] : memref<2x40x8x200xf32, #tpu.memory_space<vmem>>, vector<1x1x8x200xf32>
    %82 = vector.shape_cast %81 : vector<1x1x8x200xf32> to vector<8x200xf32>
    %83 = arith.mulf %80, %78 : vector<8x200xf32>
    %84 = arith.addf %77, %83 : vector<8x200xf32>
    %85 = arith.mulf %78, %82 : vector<8x200xf32>
    %c0_85 = arith.constant 0 : index
    %c12 = arith.constant 12 : index
    %c0_86 = arith.constant 0 : index
    %c0_87 = arith.constant 0 : index
    %86 = vector.load %arg0[%c0_85, %c12, %c0_86, %c0_87] : memref<2x40x8x200xf32, #tpu.memory_space<vmem>>, vector<1x1x8x200xf32>
    %87 = vector.shape_cast %86 : vector<1x1x8x200xf32> to vector<8x200xf32>
    %c1_88 = arith.constant 1 : index
    %c12_89 = arith.constant 12 : index
    %c0_90 = arith.constant 0 : index
    %c0_91 = arith.constant 0 : index
    %88 = vector.load %arg0[%c1_88, %c12_89, %c0_90, %c0_91] : memref<2x40x8x200xf32, #tpu.memory_space<vmem>>, vector<1x1x8x200xf32>
    %89 = vector.shape_cast %88 : vector<1x1x8x200xf32> to vector<8x200xf32>
    %90 = arith.mulf %87, %85 : vector<8x200xf32>
    %91 = arith.addf %84, %90 : vector<8x200xf32>
    %92 = arith.mulf %85, %89 : vector<8x200xf32>
    %c0_92 = arith.constant 0 : index
    %c13 = arith.constant 13 : index
    %c0_93 = arith.constant 0 : index
    %c0_94 = arith.constant 0 : index
    %93 = vector.load %arg0[%c0_92, %c13, %c0_93, %c0_94] : memref<2x40x8x200xf32, #tpu.memory_space<vmem>>, vector<1x1x8x200xf32>
    %94 = vector.shape_cast %93 : vector<1x1x8x200xf32> to vector<8x200xf32>
    %c1_95 = arith.constant 1 : index
    %c13_96 = arith.constant 13 : index
    %c0_97 = arith.constant 0 : index
    %c0_98 = arith.constant 0 : index
    %95 = vector.load %arg0[%c1_95, %c13_96, %c0_97, %c0_98] : memref<2x40x8x200xf32, #tpu.memory_space<vmem>>, vector<1x1x8x200xf32>
    %96 = vector.shape_cast %95 : vector<1x1x8x200xf32> to vector<8x200xf32>
    %97 = arith.mulf %94, %92 : vector<8x200xf32>
    %98 = arith.addf %91, %97 : vector<8x200xf32>
    %99 = arith.mulf %92, %96 : vector<8x200xf32>
    %c0_99 = arith.constant 0 : index
    %c14 = arith.constant 14 : index
    %c0_100 = arith.constant 0 : index
    %c0_101 = arith.constant 0 : index
    %100 = vector.load %arg0[%c0_99, %c14, %c0_100, %c0_101] : memref<2x40x8x200xf32, #tpu.memory_space<vmem>>, vector<1x1x8x200xf32>
    %101 = vector.shape_cast %100 : vector<1x1x8x200xf32> to vector<8x200xf32>
    %c1_102 = arith.constant 1 : index
    %c14_103 = arith.constant 14 : index
    %c0_104 = arith.constant 0 : index
    %c0_105 = arith.constant 0 : index
    %102 = vector.load %arg0[%c1_102, %c14_103, %c0_104, %c0_105] : memref<2x40x8x200xf32, #tpu.memory_space<vmem>>, vector<1x1x8x200xf32>
    %103 = vector.shape_cast %102 : vector<1x1x8x200xf32> to vector<8x200xf32>
    %104 = arith.mulf %101, %99 : vector<8x200xf32>
    %105 = arith.addf %98, %104 : vector<8x200xf32>
    %106 = arith.mulf %99, %103 : vector<8x200xf32>
    %c0_106 = arith.constant 0 : index
    %c15 = arith.constant 15 : index
    %c0_107 = arith.constant 0 : index
    %c0_108 = arith.constant 0 : index
    %107 = vector.load %arg0[%c0_106, %c15, %c0_107, %c0_108] : memref<2x40x8x200xf32, #tpu.memory_space<vmem>>, vector<1x1x8x200xf32>
    %108 = vector.shape_cast %107 : vector<1x1x8x200xf32> to vector<8x200xf32>
    %c1_109 = arith.constant 1 : index
    %c15_110 = arith.constant 15 : index
    %c0_111 = arith.constant 0 : index
    %c0_112 = arith.constant 0 : index
    %109 = vector.load %arg0[%c1_109, %c15_110, %c0_111, %c0_112] : memref<2x40x8x200xf32, #tpu.memory_space<vmem>>, vector<1x1x8x200xf32>
    %110 = vector.shape_cast %109 : vector<1x1x8x200xf32> to vector<8x200xf32>
    %111 = arith.mulf %108, %106 : vector<8x200xf32>
    %112 = arith.addf %105, %111 : vector<8x200xf32>
    %113 = arith.mulf %106, %110 : vector<8x200xf32>
    %c0_113 = arith.constant 0 : index
    %c16 = arith.constant 16 : index
    %c0_114 = arith.constant 0 : index
    %c0_115 = arith.constant 0 : index
    %114 = vector.load %arg0[%c0_113, %c16, %c0_114, %c0_115] : memref<2x40x8x200xf32, #tpu.memory_space<vmem>>, vector<1x1x8x200xf32>
    %115 = vector.shape_cast %114 : vector<1x1x8x200xf32> to vector<8x200xf32>
    %c1_116 = arith.constant 1 : index
    %c16_117 = arith.constant 16 : index
    %c0_118 = arith.constant 0 : index
    %c0_119 = arith.constant 0 : index
    %116 = vector.load %arg0[%c1_116, %c16_117, %c0_118, %c0_119] : memref<2x40x8x200xf32, #tpu.memory_space<vmem>>, vector<1x1x8x200xf32>
    %117 = vector.shape_cast %116 : vector<1x1x8x200xf32> to vector<8x200xf32>
    %118 = arith.mulf %115, %113 : vector<8x200xf32>
    %119 = arith.addf %112, %118 : vector<8x200xf32>
    %120 = arith.mulf %113, %117 : vector<8x200xf32>
    %c0_120 = arith.constant 0 : index
    %c17 = arith.constant 17 : index
    %c0_121 = arith.constant 0 : index
    %c0_122 = arith.constant 0 : index
    %121 = vector.load %arg0[%c0_120, %c17, %c0_121, %c0_122] : memref<2x40x8x200xf32, #tpu.memory_space<vmem>>, vector<1x1x8x200xf32>
    %122 = vector.shape_cast %121 : vector<1x1x8x200xf32> to vector<8x200xf32>
    %c1_123 = arith.constant 1 : index
    %c17_124 = arith.constant 17 : index
    %c0_125 = arith.constant 0 : index
    %c0_126 = arith.constant 0 : index
    %123 = vector.load %arg0[%c1_123, %c17_124, %c0_125, %c0_126] : memref<2x40x8x200xf32, #tpu.memory_space<vmem>>, vector<1x1x8x200xf32>
    %124 = vector.shape_cast %123 : vector<1x1x8x200xf32> to vector<8x200xf32>
    %125 = arith.mulf %122, %120 : vector<8x200xf32>
    %126 = arith.addf %119, %125 : vector<8x200xf32>
    %127 = arith.mulf %120, %124 : vector<8x200xf32>
    %c0_127 = arith.constant 0 : index
    %c18 = arith.constant 18 : index
    %c0_128 = arith.constant 0 : index
    %c0_129 = arith.constant 0 : index
    %128 = vector.load %arg0[%c0_127, %c18, %c0_128, %c0_129] : memref<2x40x8x200xf32, #tpu.memory_space<vmem>>, vector<1x1x8x200xf32>
    %129 = vector.shape_cast %128 : vector<1x1x8x200xf32> to vector<8x200xf32>
    %c1_130 = arith.constant 1 : index
    %c18_131 = arith.constant 18 : index
    %c0_132 = arith.constant 0 : index
    %c0_133 = arith.constant 0 : index
    %130 = vector.load %arg0[%c1_130, %c18_131, %c0_132, %c0_133] : memref<2x40x8x200xf32, #tpu.memory_space<vmem>>, vector<1x1x8x200xf32>
    %131 = vector.shape_cast %130 : vector<1x1x8x200xf32> to vector<8x200xf32>
    %132 = arith.mulf %129, %127 : vector<8x200xf32>
    %133 = arith.addf %126, %132 : vector<8x200xf32>
    %134 = arith.mulf %127, %131 : vector<8x200xf32>
    %c0_134 = arith.constant 0 : index
    %c19 = arith.constant 19 : index
    %c0_135 = arith.constant 0 : index
    %c0_136 = arith.constant 0 : index
    %135 = vector.load %arg0[%c0_134, %c19, %c0_135, %c0_136] : memref<2x40x8x200xf32, #tpu.memory_space<vmem>>, vector<1x1x8x200xf32>
    %136 = vector.shape_cast %135 : vector<1x1x8x200xf32> to vector<8x200xf32>
    %c1_137 = arith.constant 1 : index
    %c19_138 = arith.constant 19 : index
    %c0_139 = arith.constant 0 : index
    %c0_140 = arith.constant 0 : index
    %137 = vector.load %arg0[%c1_137, %c19_138, %c0_139, %c0_140] : memref<2x40x8x200xf32, #tpu.memory_space<vmem>>, vector<1x1x8x200xf32>
    %138 = vector.shape_cast %137 : vector<1x1x8x200xf32> to vector<8x200xf32>
    %139 = arith.mulf %136, %134 : vector<8x200xf32>
    %140 = arith.addf %133, %139 : vector<8x200xf32>
    %141 = arith.mulf %134, %138 : vector<8x200xf32>
    %c0_141 = arith.constant 0 : index
    %c20 = arith.constant 20 : index
    %c0_142 = arith.constant 0 : index
    %c0_143 = arith.constant 0 : index
    %142 = vector.load %arg0[%c0_141, %c20, %c0_142, %c0_143] : memref<2x40x8x200xf32, #tpu.memory_space<vmem>>, vector<1x1x8x200xf32>
    %143 = vector.shape_cast %142 : vector<1x1x8x200xf32> to vector<8x200xf32>
    %c1_144 = arith.constant 1 : index
    %c20_145 = arith.constant 20 : index
    %c0_146 = arith.constant 0 : index
    %c0_147 = arith.constant 0 : index
    %144 = vector.load %arg0[%c1_144, %c20_145, %c0_146, %c0_147] : memref<2x40x8x200xf32, #tpu.memory_space<vmem>>, vector<1x1x8x200xf32>
    %145 = vector.shape_cast %144 : vector<1x1x8x200xf32> to vector<8x200xf32>
    %146 = arith.mulf %143, %141 : vector<8x200xf32>
    %147 = arith.addf %140, %146 : vector<8x200xf32>
    %148 = arith.mulf %141, %145 : vector<8x200xf32>
    %c0_148 = arith.constant 0 : index
    %c21 = arith.constant 21 : index
    %c0_149 = arith.constant 0 : index
    %c0_150 = arith.constant 0 : index
    %149 = vector.load %arg0[%c0_148, %c21, %c0_149, %c0_150] : memref<2x40x8x200xf32, #tpu.memory_space<vmem>>, vector<1x1x8x200xf32>
    %150 = vector.shape_cast %149 : vector<1x1x8x200xf32> to vector<8x200xf32>
    %c1_151 = arith.constant 1 : index
    %c21_152 = arith.constant 21 : index
    %c0_153 = arith.constant 0 : index
    %c0_154 = arith.constant 0 : index
    %151 = vector.load %arg0[%c1_151, %c21_152, %c0_153, %c0_154] : memref<2x40x8x200xf32, #tpu.memory_space<vmem>>, vector<1x1x8x200xf32>
    %152 = vector.shape_cast %151 : vector<1x1x8x200xf32> to vector<8x200xf32>
    %153 = arith.mulf %150, %148 : vector<8x200xf32>
    %154 = arith.addf %147, %153 : vector<8x200xf32>
    %155 = arith.mulf %148, %152 : vector<8x200xf32>
    %c0_155 = arith.constant 0 : index
    %c22 = arith.constant 22 : index
    %c0_156 = arith.constant 0 : index
    %c0_157 = arith.constant 0 : index
    %156 = vector.load %arg0[%c0_155, %c22, %c0_156, %c0_157] : memref<2x40x8x200xf32, #tpu.memory_space<vmem>>, vector<1x1x8x200xf32>
    %157 = vector.shape_cast %156 : vector<1x1x8x200xf32> to vector<8x200xf32>
    %c1_158 = arith.constant 1 : index
    %c22_159 = arith.constant 22 : index
    %c0_160 = arith.constant 0 : index
    %c0_161 = arith.constant 0 : index
    %158 = vector.load %arg0[%c1_158, %c22_159, %c0_160, %c0_161] : memref<2x40x8x200xf32, #tpu.memory_space<vmem>>, vector<1x1x8x200xf32>
    %159 = vector.shape_cast %158 : vector<1x1x8x200xf32> to vector<8x200xf32>
    %160 = arith.mulf %157, %155 : vector<8x200xf32>
    %161 = arith.addf %154, %160 : vector<8x200xf32>
    %162 = arith.mulf %155, %159 : vector<8x200xf32>
    %c0_162 = arith.constant 0 : index
    %c23 = arith.constant 23 : index
    %c0_163 = arith.constant 0 : index
    %c0_164 = arith.constant 0 : index
    %163 = vector.load %arg0[%c0_162, %c23, %c0_163, %c0_164] : memref<2x40x8x200xf32, #tpu.memory_space<vmem>>, vector<1x1x8x200xf32>
    %164 = vector.shape_cast %163 : vector<1x1x8x200xf32> to vector<8x200xf32>
    %c1_165 = arith.constant 1 : index
    %c23_166 = arith.constant 23 : index
    %c0_167 = arith.constant 0 : index
    %c0_168 = arith.constant 0 : index
    %165 = vector.load %arg0[%c1_165, %c23_166, %c0_167, %c0_168] : memref<2x40x8x200xf32, #tpu.memory_space<vmem>>, vector<1x1x8x200xf32>
    %166 = vector.shape_cast %165 : vector<1x1x8x200xf32> to vector<8x200xf32>
    %167 = arith.mulf %164, %162 : vector<8x200xf32>
    %168 = arith.addf %161, %167 : vector<8x200xf32>
    %169 = arith.mulf %162, %166 : vector<8x200xf32>
    %c0_169 = arith.constant 0 : index
    %c24 = arith.constant 24 : index
    %c0_170 = arith.constant 0 : index
    %c0_171 = arith.constant 0 : index
    %170 = vector.load %arg0[%c0_169, %c24, %c0_170, %c0_171] : memref<2x40x8x200xf32, #tpu.memory_space<vmem>>, vector<1x1x8x200xf32>
    %171 = vector.shape_cast %170 : vector<1x1x8x200xf32> to vector<8x200xf32>
    %c1_172 = arith.constant 1 : index
    %c24_173 = arith.constant 24 : index
    %c0_174 = arith.constant 0 : index
    %c0_175 = arith.constant 0 : index
    %172 = vector.load %arg0[%c1_172, %c24_173, %c0_174, %c0_175] : memref<2x40x8x200xf32, #tpu.memory_space<vmem>>, vector<1x1x8x200xf32>
    %173 = vector.shape_cast %172 : vector<1x1x8x200xf32> to vector<8x200xf32>
    %174 = arith.mulf %171, %169 : vector<8x200xf32>
    %175 = arith.addf %168, %174 : vector<8x200xf32>
    %176 = arith.mulf %169, %173 : vector<8x200xf32>
    %c0_176 = arith.constant 0 : index
    %c25 = arith.constant 25 : index
    %c0_177 = arith.constant 0 : index
    %c0_178 = arith.constant 0 : index
    %177 = vector.load %arg0[%c0_176, %c25, %c0_177, %c0_178] : memref<2x40x8x200xf32, #tpu.memory_space<vmem>>, vector<1x1x8x200xf32>
    %178 = vector.shape_cast %177 : vector<1x1x8x200xf32> to vector<8x200xf32>
    %c1_179 = arith.constant 1 : index
    %c25_180 = arith.constant 25 : index
    %c0_181 = arith.constant 0 : index
    %c0_182 = arith.constant 0 : index
    %179 = vector.load %arg0[%c1_179, %c25_180, %c0_181, %c0_182] : memref<2x40x8x200xf32, #tpu.memory_space<vmem>>, vector<1x1x8x200xf32>
    %180 = vector.shape_cast %179 : vector<1x1x8x200xf32> to vector<8x200xf32>
    %181 = arith.mulf %178, %176 : vector<8x200xf32>
    %182 = arith.addf %175, %181 : vector<8x200xf32>
    %183 = arith.mulf %176, %180 : vector<8x200xf32>
    %c0_183 = arith.constant 0 : index
    %c26 = arith.constant 26 : index
    %c0_184 = arith.constant 0 : index
    %c0_185 = arith.constant 0 : index
    %184 = vector.load %arg0[%c0_183, %c26, %c0_184, %c0_185] : memref<2x40x8x200xf32, #tpu.memory_space<vmem>>, vector<1x1x8x200xf32>
    %185 = vector.shape_cast %184 : vector<1x1x8x200xf32> to vector<8x200xf32>
    %c1_186 = arith.constant 1 : index
    %c26_187 = arith.constant 26 : index
    %c0_188 = arith.constant 0 : index
    %c0_189 = arith.constant 0 : index
    %186 = vector.load %arg0[%c1_186, %c26_187, %c0_188, %c0_189] : memref<2x40x8x200xf32, #tpu.memory_space<vmem>>, vector<1x1x8x200xf32>
    %187 = vector.shape_cast %186 : vector<1x1x8x200xf32> to vector<8x200xf32>
    %188 = arith.mulf %185, %183 : vector<8x200xf32>
    %189 = arith.addf %182, %188 : vector<8x200xf32>
    %190 = arith.mulf %183, %187 : vector<8x200xf32>
    %c0_190 = arith.constant 0 : index
    %c27 = arith.constant 27 : index
    %c0_191 = arith.constant 0 : index
    %c0_192 = arith.constant 0 : index
    %191 = vector.load %arg0[%c0_190, %c27, %c0_191, %c0_192] : memref<2x40x8x200xf32, #tpu.memory_space<vmem>>, vector<1x1x8x200xf32>
    %192 = vector.shape_cast %191 : vector<1x1x8x200xf32> to vector<8x200xf32>
    %c1_193 = arith.constant 1 : index
    %c27_194 = arith.constant 27 : index
    %c0_195 = arith.constant 0 : index
    %c0_196 = arith.constant 0 : index
    %193 = vector.load %arg0[%c1_193, %c27_194, %c0_195, %c0_196] : memref<2x40x8x200xf32, #tpu.memory_space<vmem>>, vector<1x1x8x200xf32>
    %194 = vector.shape_cast %193 : vector<1x1x8x200xf32> to vector<8x200xf32>
    %195 = arith.mulf %192, %190 : vector<8x200xf32>
    %196 = arith.addf %189, %195 : vector<8x200xf32>
    %197 = arith.mulf %190, %194 : vector<8x200xf32>
    %c0_197 = arith.constant 0 : index
    %c28 = arith.constant 28 : index
    %c0_198 = arith.constant 0 : index
    %c0_199 = arith.constant 0 : index
    %198 = vector.load %arg0[%c0_197, %c28, %c0_198, %c0_199] : memref<2x40x8x200xf32, #tpu.memory_space<vmem>>, vector<1x1x8x200xf32>
    %199 = vector.shape_cast %198 : vector<1x1x8x200xf32> to vector<8x200xf32>
    %c1_200 = arith.constant 1 : index
    %c28_201 = arith.constant 28 : index
    %c0_202 = arith.constant 0 : index
    %c0_203 = arith.constant 0 : index
    %200 = vector.load %arg0[%c1_200, %c28_201, %c0_202, %c0_203] : memref<2x40x8x200xf32, #tpu.memory_space<vmem>>, vector<1x1x8x200xf32>
    %201 = vector.shape_cast %200 : vector<1x1x8x200xf32> to vector<8x200xf32>
    %202 = arith.mulf %199, %197 : vector<8x200xf32>
    %203 = arith.addf %196, %202 : vector<8x200xf32>
    %204 = arith.mulf %197, %201 : vector<8x200xf32>
    %c0_204 = arith.constant 0 : index
    %c29 = arith.constant 29 : index
    %c0_205 = arith.constant 0 : index
    %c0_206 = arith.constant 0 : index
    %205 = vector.load %arg0[%c0_204, %c29, %c0_205, %c0_206] : memref<2x40x8x200xf32, #tpu.memory_space<vmem>>, vector<1x1x8x200xf32>
    %206 = vector.shape_cast %205 : vector<1x1x8x200xf32> to vector<8x200xf32>
    %c1_207 = arith.constant 1 : index
    %c29_208 = arith.constant 29 : index
    %c0_209 = arith.constant 0 : index
    %c0_210 = arith.constant 0 : index
    %207 = vector.load %arg0[%c1_207, %c29_208, %c0_209, %c0_210] : memref<2x40x8x200xf32, #tpu.memory_space<vmem>>, vector<1x1x8x200xf32>
    %208 = vector.shape_cast %207 : vector<1x1x8x200xf32> to vector<8x200xf32>
    %209 = arith.mulf %206, %204 : vector<8x200xf32>
    %210 = arith.addf %203, %209 : vector<8x200xf32>
    %211 = arith.mulf %204, %208 : vector<8x200xf32>
    %c0_211 = arith.constant 0 : index
    %c30 = arith.constant 30 : index
    %c0_212 = arith.constant 0 : index
    %c0_213 = arith.constant 0 : index
    %212 = vector.load %arg0[%c0_211, %c30, %c0_212, %c0_213] : memref<2x40x8x200xf32, #tpu.memory_space<vmem>>, vector<1x1x8x200xf32>
    %213 = vector.shape_cast %212 : vector<1x1x8x200xf32> to vector<8x200xf32>
    %c1_214 = arith.constant 1 : index
    %c30_215 = arith.constant 30 : index
    %c0_216 = arith.constant 0 : index
    %c0_217 = arith.constant 0 : index
    %214 = vector.load %arg0[%c1_214, %c30_215, %c0_216, %c0_217] : memref<2x40x8x200xf32, #tpu.memory_space<vmem>>, vector<1x1x8x200xf32>
    %215 = vector.shape_cast %214 : vector<1x1x8x200xf32> to vector<8x200xf32>
    %216 = arith.mulf %213, %211 : vector<8x200xf32>
    %217 = arith.addf %210, %216 : vector<8x200xf32>
    %218 = arith.mulf %211, %215 : vector<8x200xf32>
    %c0_218 = arith.constant 0 : index
    %c31 = arith.constant 31 : index
    %c0_219 = arith.constant 0 : index
    %c0_220 = arith.constant 0 : index
    %219 = vector.load %arg0[%c0_218, %c31, %c0_219, %c0_220] : memref<2x40x8x200xf32, #tpu.memory_space<vmem>>, vector<1x1x8x200xf32>
    %220 = vector.shape_cast %219 : vector<1x1x8x200xf32> to vector<8x200xf32>
    %c1_221 = arith.constant 1 : index
    %c31_222 = arith.constant 31 : index
    %c0_223 = arith.constant 0 : index
    %c0_224 = arith.constant 0 : index
    %221 = vector.load %arg0[%c1_221, %c31_222, %c0_223, %c0_224] : memref<2x40x8x200xf32, #tpu.memory_space<vmem>>, vector<1x1x8x200xf32>
    %222 = vector.shape_cast %221 : vector<1x1x8x200xf32> to vector<8x200xf32>
    %223 = arith.mulf %220, %218 : vector<8x200xf32>
    %224 = arith.addf %217, %223 : vector<8x200xf32>
    %225 = arith.mulf %218, %222 : vector<8x200xf32>
    %c0_225 = arith.constant 0 : index
    %c32 = arith.constant 32 : index
    %c0_226 = arith.constant 0 : index
    %c0_227 = arith.constant 0 : index
    %226 = vector.load %arg0[%c0_225, %c32, %c0_226, %c0_227] : memref<2x40x8x200xf32, #tpu.memory_space<vmem>>, vector<1x1x8x200xf32>
    %227 = vector.shape_cast %226 : vector<1x1x8x200xf32> to vector<8x200xf32>
    %c1_228 = arith.constant 1 : index
    %c32_229 = arith.constant 32 : index
    %c0_230 = arith.constant 0 : index
    %c0_231 = arith.constant 0 : index
    %228 = vector.load %arg0[%c1_228, %c32_229, %c0_230, %c0_231] : memref<2x40x8x200xf32, #tpu.memory_space<vmem>>, vector<1x1x8x200xf32>
    %229 = vector.shape_cast %228 : vector<1x1x8x200xf32> to vector<8x200xf32>
    %230 = arith.mulf %227, %225 : vector<8x200xf32>
    %231 = arith.addf %224, %230 : vector<8x200xf32>
    %232 = arith.mulf %225, %229 : vector<8x200xf32>
    %c0_232 = arith.constant 0 : index
    %c33 = arith.constant 33 : index
    %c0_233 = arith.constant 0 : index
    %c0_234 = arith.constant 0 : index
    %233 = vector.load %arg0[%c0_232, %c33, %c0_233, %c0_234] : memref<2x40x8x200xf32, #tpu.memory_space<vmem>>, vector<1x1x8x200xf32>
    %234 = vector.shape_cast %233 : vector<1x1x8x200xf32> to vector<8x200xf32>
    %c1_235 = arith.constant 1 : index
    %c33_236 = arith.constant 33 : index
    %c0_237 = arith.constant 0 : index
    %c0_238 = arith.constant 0 : index
    %235 = vector.load %arg0[%c1_235, %c33_236, %c0_237, %c0_238] : memref<2x40x8x200xf32, #tpu.memory_space<vmem>>, vector<1x1x8x200xf32>
    %236 = vector.shape_cast %235 : vector<1x1x8x200xf32> to vector<8x200xf32>
    %237 = arith.mulf %234, %232 : vector<8x200xf32>
    %238 = arith.addf %231, %237 : vector<8x200xf32>
    %239 = arith.mulf %232, %236 : vector<8x200xf32>
    %c0_239 = arith.constant 0 : index
    %c34 = arith.constant 34 : index
    %c0_240 = arith.constant 0 : index
    %c0_241 = arith.constant 0 : index
    %240 = vector.load %arg0[%c0_239, %c34, %c0_240, %c0_241] : memref<2x40x8x200xf32, #tpu.memory_space<vmem>>, vector<1x1x8x200xf32>
    %241 = vector.shape_cast %240 : vector<1x1x8x200xf32> to vector<8x200xf32>
    %c1_242 = arith.constant 1 : index
    %c34_243 = arith.constant 34 : index
    %c0_244 = arith.constant 0 : index
    %c0_245 = arith.constant 0 : index
    %242 = vector.load %arg0[%c1_242, %c34_243, %c0_244, %c0_245] : memref<2x40x8x200xf32, #tpu.memory_space<vmem>>, vector<1x1x8x200xf32>
    %243 = vector.shape_cast %242 : vector<1x1x8x200xf32> to vector<8x200xf32>
    %244 = arith.mulf %241, %239 : vector<8x200xf32>
    %245 = arith.addf %238, %244 : vector<8x200xf32>
    %246 = arith.mulf %239, %243 : vector<8x200xf32>
    %c0_246 = arith.constant 0 : index
    %c35 = arith.constant 35 : index
    %c0_247 = arith.constant 0 : index
    %c0_248 = arith.constant 0 : index
    %247 = vector.load %arg0[%c0_246, %c35, %c0_247, %c0_248] : memref<2x40x8x200xf32, #tpu.memory_space<vmem>>, vector<1x1x8x200xf32>
    %248 = vector.shape_cast %247 : vector<1x1x8x200xf32> to vector<8x200xf32>
    %c1_249 = arith.constant 1 : index
    %c35_250 = arith.constant 35 : index
    %c0_251 = arith.constant 0 : index
    %c0_252 = arith.constant 0 : index
    %249 = vector.load %arg0[%c1_249, %c35_250, %c0_251, %c0_252] : memref<2x40x8x200xf32, #tpu.memory_space<vmem>>, vector<1x1x8x200xf32>
    %250 = vector.shape_cast %249 : vector<1x1x8x200xf32> to vector<8x200xf32>
    %251 = arith.mulf %248, %246 : vector<8x200xf32>
    %252 = arith.addf %245, %251 : vector<8x200xf32>
    %253 = arith.mulf %246, %250 : vector<8x200xf32>
    %c0_253 = arith.constant 0 : index
    %c36 = arith.constant 36 : index
    %c0_254 = arith.constant 0 : index
    %c0_255 = arith.constant 0 : index
    %254 = vector.load %arg0[%c0_253, %c36, %c0_254, %c0_255] : memref<2x40x8x200xf32, #tpu.memory_space<vmem>>, vector<1x1x8x200xf32>
    %255 = vector.shape_cast %254 : vector<1x1x8x200xf32> to vector<8x200xf32>
    %c1_256 = arith.constant 1 : index
    %c36_257 = arith.constant 36 : index
    %c0_258 = arith.constant 0 : index
    %c0_259 = arith.constant 0 : index
    %256 = vector.load %arg0[%c1_256, %c36_257, %c0_258, %c0_259] : memref<2x40x8x200xf32, #tpu.memory_space<vmem>>, vector<1x1x8x200xf32>
    %257 = vector.shape_cast %256 : vector<1x1x8x200xf32> to vector<8x200xf32>
    %258 = arith.mulf %255, %253 : vector<8x200xf32>
    %259 = arith.addf %252, %258 : vector<8x200xf32>
    %260 = arith.mulf %253, %257 : vector<8x200xf32>
    %c0_260 = arith.constant 0 : index
    %c37 = arith.constant 37 : index
    %c0_261 = arith.constant 0 : index
    %c0_262 = arith.constant 0 : index
    %261 = vector.load %arg0[%c0_260, %c37, %c0_261, %c0_262] : memref<2x40x8x200xf32, #tpu.memory_space<vmem>>, vector<1x1x8x200xf32>
    %262 = vector.shape_cast %261 : vector<1x1x8x200xf32> to vector<8x200xf32>
    %c1_263 = arith.constant 1 : index
    %c37_264 = arith.constant 37 : index
    %c0_265 = arith.constant 0 : index
    %c0_266 = arith.constant 0 : index
    %263 = vector.load %arg0[%c1_263, %c37_264, %c0_265, %c0_266] : memref<2x40x8x200xf32, #tpu.memory_space<vmem>>, vector<1x1x8x200xf32>
    %264 = vector.shape_cast %263 : vector<1x1x8x200xf32> to vector<8x200xf32>
    %265 = arith.mulf %262, %260 : vector<8x200xf32>
    %266 = arith.addf %259, %265 : vector<8x200xf32>
    %267 = arith.mulf %260, %264 : vector<8x200xf32>
    %c0_267 = arith.constant 0 : index
    %c38 = arith.constant 38 : index
    %c0_268 = arith.constant 0 : index
    %c0_269 = arith.constant 0 : index
    %268 = vector.load %arg0[%c0_267, %c38, %c0_268, %c0_269] : memref<2x40x8x200xf32, #tpu.memory_space<vmem>>, vector<1x1x8x200xf32>
    %269 = vector.shape_cast %268 : vector<1x1x8x200xf32> to vector<8x200xf32>
    %c1_270 = arith.constant 1 : index
    %c38_271 = arith.constant 38 : index
    %c0_272 = arith.constant 0 : index
    %c0_273 = arith.constant 0 : index
    %270 = vector.load %arg0[%c1_270, %c38_271, %c0_272, %c0_273] : memref<2x40x8x200xf32, #tpu.memory_space<vmem>>, vector<1x1x8x200xf32>
    %271 = vector.shape_cast %270 : vector<1x1x8x200xf32> to vector<8x200xf32>
    %272 = arith.mulf %269, %267 : vector<8x200xf32>
    %273 = arith.addf %266, %272 : vector<8x200xf32>
    %274 = arith.mulf %267, %271 : vector<8x200xf32>
    %c0_274 = arith.constant 0 : index
    %c39 = arith.constant 39 : index
    %c0_275 = arith.constant 0 : index
    %c0_276 = arith.constant 0 : index
    %275 = vector.load %arg0[%c0_274, %c39, %c0_275, %c0_276] : memref<2x40x8x200xf32, #tpu.memory_space<vmem>>, vector<1x1x8x200xf32>
    %276 = vector.shape_cast %275 : vector<1x1x8x200xf32> to vector<8x200xf32>
    %277 = arith.mulf %276, %274 : vector<8x200xf32>
    %278 = arith.addf %273, %277 : vector<8x200xf32>
    %c0_277 = arith.constant 0 : index
    %c0_278 = arith.constant 0 : index
    %279 = vector.load %arg1[%c0_277, %c0_278] : memref<8x200xf32, #tpu.memory_space<vmem>>, vector<8x200xf32>
    tpu.vector_store %arg1[%c0_277, %c0_278], %278 {strides = array<i32>} : memref<8x200xf32, #tpu.memory_space<vmem>>, vector<8x200xf32>,
    return
  }
}

</mosaic_0001>

<llo_original>
// kernel: differentiable_renderer_forward.2
$region0: #{differentiable_renderer_forward.2}
  #allocation0 [shape = 'u32[]', space=smem, size = 0x4, offset = 0x4, fixed_abs, tag = 'smem constant byte address 0x4 - core index']
  #allocation1 [shape = 'u32[144,128]{1,0:T(1,128)}', space=vmem, size = 0x12000, scoped, tag = 'internal scratch']
  %s0 = inlined_call_operand.hbm [shape: f32[3,3], index: 0, kind: input, shape index: {}]
  %s1 = inlined_call_operand.vmem [shape: f32[3], index: 1, kind: input, shape index: {}]
  %s2 = inlined_call_operand.hbm [shape: f32[3,4096], index: 2, kind: input, shape index: {}]
  %s3 = inlined_call_operand.hbm [shape: f32[1,4096], index: 3, kind: input, shape index: {}]
  %s4 = inlined_call_operand.hbm [shape: f32[1,4096], index: 4, kind: input, shape index: {}]
  %s5 = inlined_call_operand.vmem [shape: s32[1,4096], index: 5, kind: output, shape index: {0}]
  %s6 = inlined_call_operand.vmem [shape: f32[1,4096], index: 6, kind: output, shape index: {1}]
  %s7 = inlined_call_operand.vmem [shape: f32[1,4096], index: 7, kind: output, shape index: {2}]
  %8 = xla_tuple %s5, %s6, %s7
  %s9 = sld [smem:[#allocation0]]
  $region66: #{differentiable_renderer_forward.2} parent=0
    _
  %s11 = ssub.s32 1, %s9
  %s12 = scalar_select 0, %s11, %s9
  $region1: #{differentiable_renderer_forward.2} parent=0
    #allocation2 [shape = 'u8[2048]{0}', space=smem, size = 0x800, scoped, tag = 'input window, operand 0, single buffered']
    #allocation3 [shape = 's32[1]{0}', space=sflag, size = 0x4, scoped, tag = 'scoped memory for differentiable_renderer_forward.2']
    #allocation4 [shape = 's32[1]{0}', space=sflag, size = 0x4, scoped, tag = 'scoped memory for differentiable_renderer_forward.2']
    #allocation5 [shape = 's32[1]{0}', space=sflag, size = 0x4, scoped, tag = 'scoped memory for differentiable_renderer_forward.2']
    #allocation6 [shape = 'u8[512]{0}', space=smem, size = 0x200, scoped, tag = 'input window, operand 1, single buffered']
    #allocation7 [shape = 'u8[65536]{0}', space=vmem, size = 0x10000, scoped, tag = 'input window, operand 2, single buffered']
    #allocation8 [shape = 'u8[16384]{0}', space=vmem, size = 0x4000, scoped, tag = 'input window, operand 3, single buffered']
    #allocation9 [shape = 's32[1]{0}', space=sflag, size = 0x4, scoped, tag = 'scoped memory for differentiable_renderer_forward.2']
    #allocation10 [shape = 'u8[16384]{0}', space=vmem, size = 0x4000, scoped, tag = 'input window, operand 4, single buffered']
    %13 = vsyncpa [#allocation4], 0
    %14 = vsyncpa [#allocation5], 0
    %15 = vsyncpa [#allocation3], 0
    %16 = vsyncpa [#allocation9], 0
    // Predicated region
    $region2: #{differentiable_renderer_forward.2} parent=1 // pred_check
      _
    $region3: #{differentiable_renderer_forward.2} parent=1 // pred_check_branch
      %18 = sbr.rel (0) target = $region5
    $region4: #{differentiable_renderer_forward.2} parent=1 // pred_region
      %s20 = ssub.s32 64, 64
      %21 = vsyncadd [#allocation4], %s20
      %24 = dma.hbm_to_smem %s0, 64, [#allocation2], [#allocation4]
    $region5: #{differentiable_renderer_forward.2} parent=1 // pred_fallthru
      _
    // Predicated region
    $region6: #{differentiable_renderer_forward.2} parent=1 // pred_check
      _
    $region7: #{differentiable_renderer_forward.2} parent=1 // pred_check_branch
      %26 = sbr.rel (0) target = $region9
    $region8: #{differentiable_renderer_forward.2} parent=1 // pred_region
      %s28 = ssub.s32 16, 16
      %29 = vsyncadd [#allocation5], %s28
      %s31 = sshll.u32 %s1, 4
      %s32 = int_to_ptr.vmem [resolvable:$true] %s31
      %34 = dma.vmem_to_smem %s32, 16, [#allocation6], [#allocation5]
    $region9: #{differentiable_renderer_forward.2} parent=1 // pred_fallthru
      _
    // Predicated region
    $region10: #{differentiable_renderer_forward.2} parent=1 // pred_check
      _
    $region11: #{differentiable_renderer_forward.2} parent=1 // pred_check_branch
      %36 = sbr.rel (0) target = $region13
    $region12: #{differentiable_renderer_forward.2} parent=1 // pred_region
      %s38 = ssub.s32 2048, 2048
      %39 = vsyncadd [#allocation3], %s38
      %s41 = sshll.u32 [#allocation7], 4
      %s42 = int_to_ptr.vmem [resolvable:$true] %s41
      %44 = dma.hbm_to_vmem [thread:$0]  %s2, 2048, %s42, [#allocation3]
    $region13: #{differentiable_renderer_forward.2} parent=1 // pred_fallthru
      _
    // Predicated region
    $region14: #{differentiable_renderer_forward.2} parent=1 // pred_check
      _
    $region15: #{differentiable_renderer_forward.2} parent=1 // pred_check_branch
      %46 = sbr.rel (0) target = $region17
    $region16: #{differentiable_renderer_forward.2} parent=1 // pred_region
      %s48 = ssub.s32 512, 512
      %49 = vsyncadd [#allocation9], %s48
      %s51 = sshll.u32 [#allocation8], 4
      %s52 = int_to_ptr.vmem [resolvable:$true] %s51
      %54 = dma.hbm_to_vmem [thread:$0]  %s3, 512, %s52, [#allocation9]
    $region17: #{differentiable_renderer_forward.2} parent=1 // pred_fallthru
      _
    // Predicated region
    $region18: #{differentiable_renderer_forward.2} parent=1 // pred_check
      _
    $region19: #{differentiable_renderer_forward.2} parent=1 // pred_check_branch
      %56 = sbr.rel (0) target = $region21
    $region20: #{differentiable_renderer_forward.2} parent=1 // pred_region
      %s58 = ssub.s32 512, 512
      %59 = vsyncadd [#allocation9], %s58
      %s61 = sshll.u32 [#allocation10], 4
      %s62 = int_to_ptr.vmem [resolvable:$true] %s61
      %64 = dma.hbm_to_vmem [thread:$0]  %s4, 512, %s62, [#allocation9]
    $region21: #{differentiable_renderer_forward.2} parent=1 // pred_fallthru
      _
    // Predicated region
    $region22: #{differentiable_renderer_forward.2} parent=1 // pred_check
      _
    $region23: #{differentiable_renderer_forward.2} parent=1 // pred_check_branch
      %66 = sbr.rel (0) target = $region25
    $region24: #{differentiable_renderer_forward.2} parent=1 // pred_region
      %67 = dma.done [#allocation4], 64
    $region25: #{differentiable_renderer_forward.2} parent=1 // pred_fallthru
      _
    // Predicated region
    $region26: #{differentiable_renderer_forward.2} parent=1 // pred_check
      _
    $region27: #{differentiable_renderer_forward.2} parent=1 // pred_check_branch
      %69 = sbr.rel (0) target = $region29
    $region28: #{differentiable_renderer_forward.2} parent=1 // pred_region
      %70 = dma.done [#allocation5], 16
    $region29: #{differentiable_renderer_forward.2} parent=1 // pred_fallthru
      _
    // Predicated region
    $region30: #{differentiable_renderer_forward.2} parent=1 // pred_check
      _
    $region31: #{differentiable_renderer_forward.2} parent=1 // pred_check_branch
      %72 = sbr.rel (0) target = $region33
    $region32: #{differentiable_renderer_forward.2} parent=1 // pred_region
      %73 = dma.done [#allocation3], 2048
    $region33: #{differentiable_renderer_forward.2} parent=1 // pred_fallthru
      _
    // Predicated region
    $region34: #{differentiable_renderer_forward.2} parent=1 // pred_check
      _
    $region35: #{differentiable_renderer_forward.2} parent=1 // pred_check_branch
      %75 = sbr.rel (0) target = $region37
    $region36: #{differentiable_renderer_forward.2} parent=1 // pred_region
      %76 = dma.done [#allocation9], 512
    $region37: #{differentiable_renderer_forward.2} parent=1 // pred_fallthru
      _
    // Predicated region
    $region38: #{differentiable_renderer_forward.2} parent=1 // pred_check
      _
    $region39: #{differentiable_renderer_forward.2} parent=1 // pred_check_branch
      %78 = sbr.rel (0) target = $region41
    $region40: #{differentiable_renderer_forward.2} parent=1 // pred_region
      %79 = dma.done [#allocation9], 512
    $region41: #{differentiable_renderer_forward.2} parent=1 // pred_fallthru
      _
    %80 = sfence
    %v81 = vld [vmem:[#allocation7] ss:$4 sm:$0xff]
    %s82 = scalar_lea.vmem [#allocation7], 32
    %v83 = vld [vmem:[%s82] ss:$4 sm:$0xff]
    %s84 = scalar_lea.vmem [#allocation7], 64
    %v85 = vld [vmem:[%s84] ss:$4 sm:$0xff]
    %s86 = scalar_lea.vmem [#allocation7], 96
    %v87 = vld [vmem:[%s86] ss:$4 sm:$0xff]
    %s88 = scalar_lea.vmem [#allocation7], 1
    %v89 = vld [vmem:[%s88] ss:$4 sm:$0xff]
    %s90 = scalar_lea.vmem [#allocation7], 33
    %v91 = vld [vmem:[%s90] ss:$4 sm:$0xff]
    %s92 = scalar_lea.vmem [#allocation7], 65
    %v93 = vld [vmem:[%s92] ss:$4 sm:$0xff]
    %s94 = scalar_lea.vmem [#allocation7], 97
    %v95 = vld [vmem:[%s94] ss:$4 sm:$0xff]
    %s96 = scalar_lea.vmem [#allocation7], 2
    %v97 = vld [vmem:[%s96] ss:$4 sm:$0xff]
    %s98 = scalar_lea.vmem [#allocation7], 34
    %v99 = vld [vmem:[%s98] ss:$4 sm:$0xff]
    %s100 = scalar_lea.vmem [#allocation7], 66
    %v101 = vld [vmem:[%s100] ss:$4 sm:$0xff]
    %s102 = scalar_lea.vmem [#allocation7], 98
    %v103 = vld [vmem:[%s102] ss:$4 sm:$0xff]
    %s104 = sld [smem:[#allocation2]]
    %v105 = vstv %s104
    %v106 = vmul.f32 %v81, %v105
    %v107 = vmul.f32 %v83, %v105
    %v108 = vmul.f32 %v85, %v105
    %v109 = vmul.f32 %v87, %v105
    %s110 = sld [smem:[#allocation2 + $0x80]]
    %v111 = vstv %s110
    %v112 = vmul.f32 %v89, %v111
    %v113 = vmul.f32 %v91, %v111
    %v114 = vmul.f32 %v93, %v111
    %v115 = vmul.f32 %v95, %v111
    %v116 = vadd.f32 %v106, %v112
    %v117 = vadd.f32 %v107, %v113
    %v118 = vadd.f32 %v108, %v114
    %v119 = vadd.f32 %v109, %v115
    %s120 = sld [smem:[#allocation2 + $0x100]]
    %v121 = vstv %s120
    %v122 = vmul.f32 %v97, %v121
    %v123 = vmul.f32 %v99, %v121
    %v124 = vmul.f32 %v101, %v121
    %v125 = vmul.f32 %v103, %v121
    %v126 = vadd.f32 %v116, %v122
    %v127 = vadd.f32 %v117, %v123
    %v128 = vadd.f32 %v118, %v124
    %v129 = vadd.f32 %v119, %v125
    %s130 = sld [smem:[#allocation6]]
    %v131 = vstv %s130
    %v132 = vadd.f32 %v126, %v131
    %v133 = vadd.f32 %v127, %v131
    %v134 = vadd.f32 %v128, %v131
    %v135 = vadd.f32 %v129, %v131
    %v136 = vmax.f32 %v132, 0.0
    %v137 = vmax.f32 %v133, 0.0
    %v138 = vmax.f32 %v134, 0.0
    %v139 = vmax.f32 %v135, 0.0
    %v140 = vmin.f32 %v136, 39.0
    %v141 = vmin.f32 %v137, 39.0
    %v142 = vmin.f32 %v138, 39.0
    %v143 = vmin.f32 %v139, 39.0
    %v144 = vcvt.f32.s32.to.zero.pseudo %v140
    %v145 = vcvt.f32.s32.to.zero.pseudo %v141
    %v146 = vcvt.f32.s32.to.zero.pseudo %v142
    %v147 = vcvt.f32.s32.to.zero.pseudo %v143
    %s148 = sld [smem:[#allocation2 + $0x1]]
    %v149 = vstv %s148
    %v150 = vmul.f32 %v81, %v149
    %v151 = vmul.f32 %v83, %v149
    %v152 = vmul.f32 %v85, %v149
    %v153 = vmul.f32 %v87, %v149
    %s154 = sld [smem:[#allocation2 + $0x81]]
    %v155 = vstv %s154
    %v156 = vmul.f32 %v89, %v155
    %v157 = vmul.f32 %v91, %v155
    %v158 = vmul.f32 %v93, %v155
    %v159 = vmul.f32 %v95, %v155
    %v160 = vadd.f32 %v150, %v156
    %v161 = vadd.f32 %v151, %v157
    %v162 = vadd.f32 %v152, %v158
    %v163 = vadd.f32 %v153, %v159
    %s164 = sld [smem:[#allocation2 + $0x101]]
    %v165 = vstv %s164
    %v166 = vmul.f32 %v97, %v165
    %v167 = vmul.f32 %v99, %v165
    %v168 = vmul.f32 %v101, %v165
    %v169 = vmul.f32 %v103, %v165
    %v170 = vadd.f32 %v160, %v166
    %v171 = vadd.f32 %v161, %v167
    %v172 = vadd.f32 %v162, %v168
    %v173 = vadd.f32 %v163, %v169
    %s174 = sld [smem:[#allocation6 + $0x1]]
    %v175 = vstv %s174
    %v176 = vadd.f32 %v170, %v175
    %v177 = vadd.f32 %v171, %v175
    %v178 = vadd.f32 %v172, %v175
    %v179 = vadd.f32 %v173, %v175
    %v180 = vmax.f32 %v176, 0.0
    %v181 = vmax.f32 %v177, 0.0
    %v182 = vmax.f32 %v178, 0.0
    %v183 = vmax.f32 %v179, 0.0
    %v184 = vmin.f32 %v180, 39.0
    %v185 = vmin.f32 %v181, 39.0
    %v186 = vmin.f32 %v182, 39.0
    %v187 = vmin.f32 %v183, 39.0
    %v188 = vcvt.f32.s32.to.zero.pseudo %v184
    %v189 = vcvt.f32.s32.to.zero.pseudo %v185
    %v190 = vcvt.f32.s32.to.zero.pseudo %v186
    %v191 = vcvt.f32.s32.to.zero.pseudo %v187
    %s192 = sld [smem:[#allocation2 + $0x2]]
    %v193 = vstv %s192
    %v194 = vmul.f32 %v81, %v193
    %v195 = vmul.f32 %v83, %v193
    %v196 = vmul.f32 %v85, %v193
    %v197 = vmul.f32 %v87, %v193
    %s198 = sld [smem:[#allocation2 + $0x82]]
    %v199 = vstv %s198
    %v200 = vmul.f32 %v89, %v199
    %v201 = vmul.f32 %v91, %v199
    %v202 = vmul.f32 %v93, %v199
    %v203 = vmul.f32 %v95, %v199
    %v204 = vadd.f32 %v194, %v200
    %v205 = vadd.f32 %v195, %v201
    %v206 = vadd.f32 %v196, %v202
    %v207 = vadd.f32 %v197, %v203
    %s208 = sld [smem:[#allocation2 + $0x102]]
    %v209 = vstv %s208
    %v210 = vmul.f32 %v97, %v209
    %v211 = vmul.f32 %v99, %v209
    %v212 = vmul.f32 %v101, %v209
    %v213 = vmul.f32 %v103, %v209
    %v214 = vadd.f32 %v204, %v210
    %v215 = vadd.f32 %v205, %v211
    %v216 = vadd.f32 %v206, %v212
    %v217 = vadd.f32 %v207, %v213
    %s218 = sld [smem:[#allocation6 + $0x2]]
    %v219 = vstv %s218
    %v220 = vadd.f32 %v214, %v219
    %v221 = vadd.f32 %v215, %v219
    %v222 = vadd.f32 %v216, %v219
    %v223 = vadd.f32 %v217, %v219
    %v224 = vmax.f32 %v220, 0.0
    %v225 = vmax.f32 %v221, 0.0
    %v226 = vmax.f32 %v222, 0.0
    %v227 = vmax.f32 %v223, 0.0
    %v228 = vmin.f32 %v224, 39.0
    %v229 = vmin.f32 %v225, 39.0
    %v230 = vmin.f32 %v226, 39.0
    %v231 = vmin.f32 %v227, 39.0
    %v232 = vcvt.f32.s32.to.zero.pseudo %v228
    %v233 = vcvt.f32.s32.to.zero.pseudo %v229
    %v234 = vcvt.f32.s32.to.zero.pseudo %v230
    %v235 = vcvt.f32.s32.to.zero.pseudo %v231
    %v236 = vmul.u32 %v232, 1600
    %v237 = vmul.u32 %v233, 1600
    %v238 = vmul.u32 %v234, 1600
    %v239 = vmul.u32 %v235, 1600
    %v240 = vmul.u32 %v144, 40
    %v241 = vmul.u32 %v145, 40
    %v242 = vmul.u32 %v146, 40
    %v243 = vmul.u32 %v147, 40
    %v244 = vadd.s32 %v236, %v240
    %v245 = vadd.s32 %v237, %v241
    %v246 = vadd.s32 %v238, %v242
    %v247 = vadd.s32 %v239, %v243
    %v248 = vadd.s32 %v244, %v188
    %v249 = vadd.s32 %v245, %v189
    %v250 = vadd.s32 %v246, %v190
    %v251 = vadd.s32 %v247, %v191
    %252 = vst [vmem:[%s5] sm:$0xff] %v248
    %253 = vst [vmem:[%s5 + $0x8] sm:$0xff] %v249
    %254 = vst [vmem:[%s5 + $0x10] sm:$0xff] %v250
    %255 = vst [vmem:[%s5 + $0x18] sm:$0xff] %v251
    %v256 = vld [vmem:[#allocation8] sm:$0xff]
    %v257 = vld [vmem:[#allocation8 + $0x8] sm:$0xff]
    %v258 = vld [vmem:[#allocation8 + $0x10] sm:$0xff]
    %v259 = vld [vmem:[#allocation8 + $0x18] sm:$0xff]
    %v260 = vxor.u32 %v256, 2147483648
    %v261 = vxor.u32 %v257, 2147483648
    %v262 = vxor.u32 %v258, 2147483648
    %v263 = vxor.u32 %v259, 2147483648
    %v264 = vmul.f32 %v260, 1.442695
    %v265 = vpow.pop %v264
    %v266 = vmul.f32 %v261, 1.442695
    %v267 = vpow.pop %v266
    %v268 = vmul.f32 %v262, 1.442695
    %v269 = vpow.pop %v268
    %v270 = vmul.f32 %v263, 1.442695
    %v271 = vpow.pop %v270
    %v272 = vadd.f32 %v265, 1.0
    %v273 = vadd.f32 %v267, 1.0
    %v274 = vadd.f32 %v269, 1.0
    %v275 = vadd.f32 %v271, 1.0
    %v276 = vrcp.pop %v272
    %v277 = vmul.f32 1.0, %v276
    %v278 = vrcp.pop %v273
    %v279 = vmul.f32 1.0, %v278
    %v280 = vrcp.pop %v274
    %v281 = vmul.f32 1.0, %v280
    %v282 = vrcp.pop %v275
    %v283 = vmul.f32 1.0, %v282
    %v284 = vld [vmem:[#allocation10] sm:$0xff]
    %v285 = vld [vmem:[#allocation10 + $0x8] sm:$0xff]
    %v286 = vld [vmem:[#allocation10 + $0x10] sm:$0xff]
    %v287 = vld [vmem:[#allocation10 + $0x18] sm:$0xff]
    %v288 = vxor.u32 %v284, 2147483648
    %v289 = vxor.u32 %v285, 2147483648
    %v290 = vxor.u32 %v286, 2147483648
    %v291 = vxor.u32 %v287, 2147483648
    %v292 = vmul.f32 %v288, 1.442695
    %v293 = vpow.pop %v292
    %v294 = vmul.f32 %v289, 1.442695
    %v295 = vpow.pop %v294
    %v296 = vmul.f32 %v290, 1.442695
    %v297 = vpow.pop %v296
    %v298 = vmul.f32 %v291, 1.442695
    %v299 = vpow.pop %v298
    %v300 = vadd.f32 %v293, 1.0
    %v301 = vadd.f32 %v295, 1.0
    %v302 = vadd.f32 %v297, 1.0
    %v303 = vadd.f32 %v299, 1.0
    %v304 = vrcp.pop %v300
    %v305 = vmul.f32 1.0, %v304
    %v306 = vrcp.pop %v301
    %v307 = vmul.f32 1.0, %v306
    %v308 = vrcp.pop %v302
    %v309 = vmul.f32 1.0, %v308
    %v310 = vrcp.pop %v303
    %v311 = vmul.f32 1.0, %v310
    %v312 = vmul.f32 %v277, %v305
    %v313 = vmul.f32 %v279, %v307
    %v314 = vmul.f32 %v281, %v309
    %v315 = vmul.f32 %v283, %v311
    %316 = vst [vmem:[%s6] sm:$0xff] %v312
    %317 = vst [vmem:[%s6 + $0x8] sm:$0xff] %v313
    %318 = vst [vmem:[%s6 + $0x10] sm:$0xff] %v314
    %319 = vst [vmem:[%s6 + $0x18] sm:$0xff] %v315
    %v320 = vsub.f32 1.0, %v305
    %v321 = vsub.f32 1.0, %v307
    %v322 = vsub.f32 1.0, %v309
    %v323 = vsub.f32 1.0, %v311
    %324 = vst [vmem:[%s7] sm:$0xff] %v320
    %325 = vst [vmem:[%s7 + $0x8] sm:$0xff] %v321
    %326 = vst [vmem:[%s7 + $0x10] sm:$0xff] %v322
    %327 = vst [vmem:[%s7 + $0x18] sm:$0xff] %v323
    // Predicated region
    $region42: #{differentiable_renderer_forward.2} parent=1 // pred_check
      _
    $region43: #{differentiable_renderer_forward.2} parent=1 // pred_check_branch
      %329 = sbr.rel (0) target = $region45
    $region44: #{differentiable_renderer_forward.2} parent=1 // pred_region
      _
    $region45: #{differentiable_renderer_forward.2} parent=1 // pred_fallthru
      _
    // Predicated region
    $region46: #{differentiable_renderer_forward.2} parent=1 // pred_check
      _
    $region47: #{differentiable_renderer_forward.2} parent=1 // pred_check_branch
      %331 = sbr.rel (0) target = $region49
    $region48: #{differentiable_renderer_forward.2} parent=1 // pred_region
      _
    $region49: #{differentiable_renderer_forward.2} parent=1 // pred_fallthru
      _
    // Predicated region
    $region50: #{differentiable_renderer_forward.2} parent=1 // pred_check
      _
    $region51: #{differentiable_renderer_forward.2} parent=1 // pred_check_branch
      %333 = sbr.rel (0) target = $region53
    $region52: #{differentiable_renderer_forward.2} parent=1 // pred_region
      _
    $region53: #{differentiable_renderer_forward.2} parent=1 // pred_fallthru
      _
    // Predicated region
    $region54: #{differentiable_renderer_forward.2} parent=1 // pred_check
      _
    $region55: #{differentiable_renderer_forward.2} parent=1 // pred_check_branch
      %335 = sbr.rel (0) target = $region57
    $region56: #{differentiable_renderer_forward.2} parent=1 // pred_region
      _
    $region57: #{differentiable_renderer_forward.2} parent=1 // pred_fallthru
      _
    // Predicated region
    $region58: #{differentiable_renderer_forward.2} parent=1 // pred_check
      _
    $region59: #{differentiable_renderer_forward.2} parent=1 // pred_check_branch
      %337 = sbr.rel (0) target = $region61
    $region60: #{differentiable_renderer_forward.2} parent=1 // pred_region
      _
    $region61: #{differentiable_renderer_forward.2} parent=1 // pred_fallthru
      _
    // Predicated region
    $region62: #{differentiable_renderer_forward.2} parent=1 // pred_check
      _
    $region63: #{differentiable_renderer_forward.2} parent=1 // pred_check_branch
      %339 = sbr.rel (0) target = $region65
    $region64: #{differentiable_renderer_forward.2} parent=1 // pred_region
      _
    $region65: #{differentiable_renderer_forward.2} parent=1 // pred_fallthru
      _
    %340 = vsyncpa [#allocation3], 1
    %341 = vsyncpa [#allocation9], 1
    %342 = vsyncpa [#allocation4], 1
    %343 = vsyncpa [#allocation5], 1

// kernel: differentiable_renderer_forward.3
$region0: #{differentiable_renderer_forward.3}
  #allocation0 [shape = 'u32[]', space=smem, size = 0x4, offset = 0x4, fixed_abs, tag = 'smem constant byte address 0x4 - core index']
  #allocation1 [shape = 'u32[144,128]{1,0:T(1,128)}', space=vmem, size = 0x12000, scoped, tag = 'internal scratch']
  %s0 = inlined_call_operand.vmem [shape: f32[2,40,8,200], index: 0, kind: input, shape index: {}]
  %s1 = inlined_call_operand.vmem [shape: f32[8,200], index: 1, kind: output, shape index: {}]
  %s2 = sld [smem:[#allocation0]]
  $region14: #{differentiable_renderer_forward.3} parent=0
    _
  %s4 = ssub.s32 1, %s2
  %s5 = scalar_select 0, %s4, %s2
  // Predicated region
  $region2: #{differentiable_renderer_forward.3} parent=0 // pred_check
    _
  $region3: #{differentiable_renderer_forward.3} parent=0 // pred_check_branch
    %7 = sbr.rel (0) target = $region5
  $region4: #{differentiable_renderer_forward.3} parent=0 // pred_region
    _
  $region5: #{differentiable_renderer_forward.3} parent=0 // pred_fallthru
    _
  %v8 = vld [vmem:[%s0] sm:$0xff]
  %v9 = vld [vmem:[%s0 + $0x8] sm:$0xff]
  %s10 = scalar_lea.vmem %s0, 640
  %v11 = vld [vmem:[%s10] sm:$0xff]
  %v12 = vld [vmem:[%s10 + $0x8] sm:$0xff]
  %v13 = vadd.f32 %v8, 0.0
  %v14 = vadd.f32 %v9, 0.0
  %s15 = scalar_lea.vmem %s0, 16
  %v16 = vld [vmem:[%s15] sm:$0xff]
  %v17 = vld [vmem:[%s15 + $0x8] sm:$0xff]
  %s18 = scalar_lea.vmem %s0, 656
  %v19 = vld [vmem:[%s18] sm:$0xff]
  %v20 = vld [vmem:[%s18 + $0x8] sm:$0xff]
  %v21 = vmul.f32 %v16, %v11
  %v22 = vmul.f32 %v17, %v12
  %v23 = vadd.f32 %v13, %v21
  %v24 = vadd.f32 %v14, %v22
  %v25 = vmul.f32 %v11, %v19
  %v26 = vmul.f32 %v12, %v20
  %s27 = scalar_lea.vmem %s0, 32
  %v28 = vld [vmem:[%s27] sm:$0xff]
  %v29 = vld [vmem:[%s27 + $0x8] sm:$0xff]
  %s30 = scalar_lea.vmem %s0, 672
  %v31 = vld [vmem:[%s30] sm:$0xff]
  %v32 = vld [vmem:[%s30 + $0x8] sm:$0xff]
  %v33 = vmul.f32 %v28, %v25
  %v34 = vmul.f32 %v29, %v26
  %v35 = vadd.f32 %v23, %v33
  %v36 = vadd.f32 %v24, %v34
  %v37 = vmul.f32 %v25, %v31
  %v38 = vmul.f32 %v26, %v32
  %s39 = scalar_lea.vmem %s0, 48
  %v40 = vld [vmem:[%s39] sm:$0xff]
  %v41 = vld [vmem:[%s39 + $0x8] sm:$0xff]
  %s42 = scalar_lea.vmem %s0, 688
  %v43 = vld [vmem:[%s42] sm:$0xff]
  %v44 = vld [vmem:[%s42 + $0x8] sm:$0xff]
  %v45 = vmul.f32 %v40, %v37
  %v46 = vmul.f32 %v41, %v38
  %v47 = vadd.f32 %v35, %v45
  %v48 = vadd.f32 %v36, %v46
  %v49 = vmul.f32 %v37, %v43
  %v50 = vmul.f32 %v38, %v44
  %s51 = scalar_lea.vmem %s0, 64
  %v52 = vld [vmem:[%s51] sm:$0xff]
  %v53 = vld [vmem:[%s51 + $0x8] sm:$0xff]
  %s54 = scalar_lea.vmem %s0, 704
  %v55 = vld [vmem:[%s54] sm:$0xff]
  %v56 = vld [vmem:[%s54 + $0x8] sm:$0xff]
  %v57 = vmul.f32 %v52, %v49
  %v58 = vmul.f32 %v53, %v50
  %v59 = vadd.f32 %v47, %v57
  %v60 = vadd.f32 %v48, %v58
  %v61 = vmul.f32 %v49, %v55
  %v62 = vmul.f32 %v50, %v56
  %s63 = scalar_lea.vmem %s0, 80
  %v64 = vld [vmem:[%s63] sm:$0xff]
  %v65 = vld [vmem:[%s63 + $0x8] sm:$0xff]
  %s66 = scalar_lea.vmem %s0, 720
  %v67 = vld [vmem:[%s66] sm:$0xff]
  %v68 = vld [vmem:[%s66 + $0x8] sm:$0xff]
  %v69 = vmul.f32 %v64, %v61
  %v70 = vmul.f32 %v65, %v62
  %v71 = vadd.f32 %v59, %v69
  %v72 = vadd.f32 %v60, %v70
  %v73 = vmul.f32 %v61, %v67
  %v74 = vmul.f32 %v62, %v68
  %s75 = scalar_lea.vmem %s0, 96
  %v76 = vld [vmem:[%s75] sm:$0xff]
  %v77 = vld [vmem:[%s75 + $0x8] sm:$0xff]
  %s78 = scalar_lea.vmem %s0, 736
  %v79 = vld [vmem:[%s78] sm:$0xff]
  %v80 = vld [vmem:[%s78 + $0x8] sm:$0xff]
  %v81 = vmul.f32 %v76, %v73
  %v82 = vmul.f32 %v77, %v74
  %v83 = vadd.f32 %v71, %v81
  %v84 = vadd.f32 %v72, %v82
  %v85 = vmul.f32 %v73, %v79
  %v86 = vmul.f32 %v74, %v80
  %s87 = scalar_lea.vmem %s0, 112
  %v88 = vld [vmem:[%s87] sm:$0xff]
  %v89 = vld [vmem:[%s87 + $0x8] sm:$0xff]
  %s90 = scalar_lea.vmem %s0, 752
  %v91 = vld [vmem:[%s90] sm:$0xff]
  %v92 = vld [vmem:[%s90 + $0x8] sm:$0xff]
  %v93 = vmul.f32 %v88, %v85
  %v94 = vmul.f32 %v89, %v86
  %v95 = vadd.f32 %v83, %v93
  %v96 = vadd.f32 %v84, %v94
  %v97 = vmul.f32 %v85, %v91
  %v98 = vmul.f32 %v86, %v92
  %s99 = scalar_lea.vmem %s0, 128
  %v100 = vld [vmem:[%s99] sm:$0xff]
  %v101 = vld [vmem:[%s99 + $0x8] sm:$0xff]
  %s102 = scalar_lea.vmem %s0, 768
  %v103 = vld [vmem:[%s102] sm:$0xff]
  %v104 = vld [vmem:[%s102 + $0x8] sm:$0xff]
  %v105 = vmul.f32 %v100, %v97
  %v106 = vmul.f32 %v101, %v98
  %v107 = vadd.f32 %v95, %v105
  %v108 = vadd.f32 %v96, %v106
  %v109 = vmul.f32 %v97, %v103
  %v110 = vmul.f32 %v98, %v104
  %s111 = scalar_lea.vmem %s0, 144
  %v112 = vld [vmem:[%s111] sm:$0xff]
  %v113 = vld [vmem:[%s111 + $0x8] sm:$0xff]
  %s114 = scalar_lea.vmem %s0, 784
  %v115 = vld [vmem:[%s114] sm:$0xff]
  %v116 = vld [vmem:[%s114 + $0x8] sm:$0xff]
  %v117 = vmul.f32 %v112, %v109
  %v118 = vmul.f32 %v113, %v110
  %v119 = vadd.f32 %v107, %v117
  %v120 = vadd.f32 %v108, %v118
  %v121 = vmul.f32 %v109, %v115
  %v122 = vmul.f32 %v110, %v116
  %s123 = scalar_lea.vmem %s0, 160
  %v124 = vld [vmem:[%s123] sm:$0xff]
  %v125 = vld [vmem:[%s123 + $0x8] sm:$0xff]
  %s126 = scalar_lea.vmem %s0, 800
  %v127 = vld [vmem:[%s126] sm:$0xff]
  %v128 = vld [vmem:[%s126 + $0x8] sm:$0xff]
  %v129 = vmul.f32 %v124, %v121
  %v130 = vmul.f32 %v125, %v122
  %v131 = vadd.f32 %v119, %v129
  %v132 = vadd.f32 %v120, %v130
  %v133 = vmul.f32 %v121, %v127
  %v134 = vmul.f32 %v122, %v128
  %s135 = scalar_lea.vmem %s0, 176
  %v136 = vld [vmem:[%s135] sm:$0xff]
  %v137 = vld [vmem:[%s135 + $0x8] sm:$0xff]
  %s138 = scalar_lea.vmem %s0, 816
  %v139 = vld [vmem:[%s138] sm:$0xff]
  %v140 = vld [vmem:[%s138 + $0x8] sm:$0xff]
  %v141 = vmul.f32 %v136, %v133
  %v142 = vmul.f32 %v137, %v134
  %v143 = vadd.f32 %v131, %v141
  %v144 = vadd.f32 %v132, %v142
  %v145 = vmul.f32 %v133, %v139
  %v146 = vmul.f32 %v134, %v140
  %s147 = scalar_lea.vmem %s0, 192
  %v148 = vld [vmem:[%s147] sm:$0xff]
  %v149 = vld [vmem:[%s147 + $0x8] sm:$0xff]
  %s150 = scalar_lea.vmem %s0, 832
  %v151 = vld [vmem:[%s150] sm:$0xff]
  %v152 = vld [vmem:[%s150 + $0x8] sm:$0xff]
  %v153 = vmul.f32 %v148, %v145
  %v154 = vmul.f32 %v149, %v146
  %v155 = vadd.f32 %v143, %v153
  %v156 = vadd.f32 %v144, %v154
  %v157 = vmul.f32 %v145, %v151
  %v158 = vmul.f32 %v146, %v152
  %s159 = scalar_lea.vmem %s0, 208
  %v160 = vld [vmem:[%s159] sm:$0xff]
  %v161 = vld [vmem:[%s159 + $0x8] sm:$0xff]
  %s162 = scalar_lea.vmem %s0, 848
  %v163 = vld [vmem:[%s162] sm:$0xff]
  %v164 = vld [vmem:[%s162 + $0x8] sm:$0xff]
  %v165 = vmul.f32 %v160, %v157
  %v166 = vmul.f32 %v161, %v158
  %v167 = vadd.f32 %v155, %v165
  %v168 = vadd.f32 %v156, %v166
  %v169 = vmul.f32 %v157, %v163
  %v170 = vmul.f32 %v158, %v164
  %s171 = scalar_lea.vmem %s0, 224
  %v172 = vld [vmem:[%s171] sm:$0xff]
  %v173 = vld [vmem:[%s171 + $0x8] sm:$0xff]
  %s174 = scalar_lea.vmem %s0, 864
  %v175 = vld [vmem:[%s174] sm:$0xff]
  %v176 = vld [vmem:[%s174 + $0x8] sm:$0xff]
  %v177 = vmul.f32 %v172, %v169
  %v178 = vmul.f32 %v173, %v170
  %v179 = vadd.f32 %v167, %v177
  %v180 = vadd.f32 %v168, %v178
  %v181 = vmul.f32 %v169, %v175
  %v182 = vmul.f32 %v170, %v176
  %s183 = scalar_lea.vmem %s0, 240
  %v184 = vld [vmem:[%s183] sm:$0xff]
  %v185 = vld [vmem:[%s183 + $0x8] sm:$0xff]
  %s186 = scalar_lea.vmem %s0, 880
  %v187 = vld [vmem:[%s186] sm:$0xff]
  %v188 = vld [vmem:[%s186 + $0x8] sm:$0xff]
  %v189 = vmul.f32 %v184, %v181
  %v190 = vmul.f32 %v185, %v182
  %v191 = vadd.f32 %v179, %v189
  %v192 = vadd.f32 %v180, %v190
  %v193 = vmul.f32 %v181, %v187
  %v194 = vmul.f32 %v182, %v188
  %s195 = scalar_lea.vmem %s0, 256
  %v196 = vld [vmem:[%s195] sm:$0xff]
  %v197 = vld [vmem:[%s195 + $0x8] sm:$0xff]
  %s198 = scalar_lea.vmem %s0, 896
  %v199 = vld [vmem:[%s198] sm:$0xff]
  %v200 = vld [vmem:[%s198 + $0x8] sm:$0xff]
  %v201 = vmul.f32 %v196, %v193
  %v202 = vmul.f32 %v197, %v194
  %v203 = vadd.f32 %v191, %v201
  %v204 = vadd.f32 %v192, %v202
  %v205 = vmul.f32 %v193, %v199
  %v206 = vmul.f32 %v194, %v200
  %s207 = scalar_lea.vmem %s0, 272
  %v208 = vld [vmem:[%s207] sm:$0xff]
  %v209 = vld [vmem:[%s207 + $0x8] sm:$0xff]
  %s210 = scalar_lea.vmem %s0, 912
  %v211 = vld [vmem:[%s210] sm:$0xff]
  %v212 = vld [vmem:[%s210 + $0x8] sm:$0xff]
  %v213 = vmul.f32 %v208, %v205
  %v214 = vmul.f32 %v209, %v206
  %v215 = vadd.f32 %v203, %v213
  %v216 = vadd.f32 %v204, %v214
  %v217 = vmul.f32 %v205, %v211
  %v218 = vmul.f32 %v206, %v212
  %s219 = scalar_lea.vmem %s0, 288
  %v220 = vld [vmem:[%s219] sm:$0xff]
  %v221 = vld [vmem:[%s219 + $0x8] sm:$0xff]
  %s222 = scalar_lea.vmem %s0, 928
  %v223 = vld [vmem:[%s222] sm:$0xff]
  %v224 = vld [vmem:[%s222 + $0x8] sm:$0xff]
  %v225 = vmul.f32 %v220, %v217
  %v226 = vmul.f32 %v221, %v218
  %v227 = vadd.f32 %v215, %v225
  %v228 = vadd.f32 %v216, %v226
  %v229 = vmul.f32 %v217, %v223
  %v230 = vmul.f32 %v218, %v224
  %s231 = scalar_lea.vmem %s0, 304
  %v232 = vld [vmem:[%s231] sm:$0xff]
  %v233 = vld [vmem:[%s231 + $0x8] sm:$0xff]
  %s234 = scalar_lea.vmem %s0, 944
  %v235 = vld [vmem:[%s234] sm:$0xff]
  %v236 = vld [vmem:[%s234 + $0x8] sm:$0xff]
  %v237 = vmul.f32 %v232, %v229
  %v238 = vmul.f32 %v233, %v230
  %v239 = vadd.f32 %v227, %v237
  %v240 = vadd.f32 %v228, %v238
  %v241 = vmul.f32 %v229, %v235
  %v242 = vmul.f32 %v230, %v236
  %s243 = scalar_lea.vmem %s0, 320
  %v244 = vld [vmem:[%s243] sm:$0xff]
  %v245 = vld [vmem:[%s243 + $0x8] sm:$0xff]
  %s246 = scalar_lea.vmem %s0, 960
  %v247 = vld [vmem:[%s246] sm:$0xff]
  %v248 = vld [vmem:[%s246 + $0x8] sm:$0xff]
  %v249 = vmul.f32 %v244, %v241
  %v250 = vmul.f32 %v245, %v242
  %v251 = vadd.f32 %v239, %v249
  %v252 = vadd.f32 %v240, %v250
  %v253 = vmul.f32 %v241, %v247
  %v254 = vmul.f32 %v242, %v248
  %s255 = scalar_lea.vmem %s0, 336
  %v256 = vld [vmem:[%s255] sm:$0xff]
  %v257 = vld [vmem:[%s255 + $0x8] sm:$0xff]
  %s258 = scalar_lea.vmem %s0, 976
  %v259 = vld [vmem:[%s258] sm:$0xff]
  %v260 = vld [vmem:[%s258 + $0x8] sm:$0xff]
  %v261 = vmul.f32 %v256, %v253
  %v262 = vmul.f32 %v257, %v254
  %v263 = vadd.f32 %v251, %v261
  %v264 = vadd.f32 %v252, %v262
  %v265 = vmul.f32 %v253, %v259
  %v266 = vmul.f32 %v254, %v260
  %s267 = scalar_lea.vmem %s0, 352
  %v268 = vld [vmem:[%s267] sm:$0xff]
  %v269 = vld [vmem:[%s267 + $0x8] sm:$0xff]
  %s270 = scalar_lea.vmem %s0, 992
  %v271 = vld [vmem:[%s270] sm:$0xff]
  %v272 = vld [vmem:[%s270 + $0x8] sm:$0xff]
  %v273 = vmul.f32 %v268, %v265
  %v274 = vmul.f32 %v269, %v266
  %v275 = vadd.f32 %v263, %v273
  %v276 = vadd.f32 %v264, %v274
  %v277 = vmul.f32 %v265, %v271
  %v278 = vmul.f32 %v266, %v272
  %s279 = scalar_lea.vmem %s0, 368
  %v280 = vld [vmem:[%s279] sm:$0xff]
  %v281 = vld [vmem:[%s279 + $0x8] sm:$0xff]
  %s282 = scalar_lea.vmem %s0, 1008
  %v283 = vld [vmem:[%s282] sm:$0xff]
  %v284 = vld [vmem:[%s282 + $0x8] sm:$0xff]
  %v285 = vmul.f32 %v280, %v277
  %v286 = vmul.f32 %v281, %v278
  %v287 = vadd.f32 %v275, %v285
  %v288 = vadd.f32 %v276, %v286
  %v289 = vmul.f32 %v277, %v283
  %v290 = vmul.f32 %v278, %v284
  %s291 = scalar_lea.vmem %s0, 384
  %v292 = vld [vmem:[%s291] sm:$0xff]
  %v293 = vld [vmem:[%s291 + $0x8] sm:$0xff]
  %s294 = scalar_lea.vmem %s0, 1024
  %v295 = vld [vmem:[%s294] sm:$0xff]
  %v296 = vld [vmem:[%s294 + $0x8] sm:$0xff]
  %v297 = vmul.f32 %v292, %v289
  %v298 = vmul.f32 %v293, %v290
  %v299 = vadd.f32 %v287, %v297
  %v300 = vadd.f32 %v288, %v298
  %v301 = vmul.f32 %v289, %v295
  %v302 = vmul.f32 %v290, %v296
  %s303 = scalar_lea.vmem %s0, 400
  %v304 = vld [vmem:[%s303] sm:$0xff]
  %v305 = vld [vmem:[%s303 + $0x8] sm:$0xff]
  %s306 = scalar_lea.vmem %s0, 1040
  %v307 = vld [vmem:[%s306] sm:$0xff]
  %v308 = vld [vmem:[%s306 + $0x8] sm:$0xff]
  %v309 = vmul.f32 %v304, %v301
  %v310 = vmul.f32 %v305, %v302
  %v311 = vadd.f32 %v299, %v309
  %v312 = vadd.f32 %v300, %v310
  %v313 = vmul.f32 %v301, %v307
  %v314 = vmul.f32 %v302, %v308
  %s315 = scalar_lea.vmem %s0, 416
  %v316 = vld [vmem:[%s315] sm:$0xff]
  %v317 = vld [vmem:[%s315 + $0x8] sm:$0xff]
  %s318 = scalar_lea.vmem %s0, 1056
  %v319 = vld [vmem:[%s318] sm:$0xff]
  %v320 = vld [vmem:[%s318 + $0x8] sm:$0xff]
  %v321 = vmul.f32 %v316, %v313
  %v322 = vmul.f32 %v317, %v314
  %v323 = vadd.f32 %v311, %v321
  %v324 = vadd.f32 %v312, %v322
  %v325 = vmul.f32 %v313, %v319
  %v326 = vmul.f32 %v314, %v320
  %s327 = scalar_lea.vmem %s0, 432
  %v328 = vld [vmem:[%s327] sm:$0xff]
  %v329 = vld [vmem:[%s327 + $0x8] sm:$0xff]
  %s330 = scalar_lea.vmem %s0, 1072
  %v331 = vld [vmem:[%s330] sm:$0xff]
  %v332 = vld [vmem:[%s330 + $0x8] sm:$0xff]
  %v333 = vmul.f32 %v328, %v325
  %v334 = vmul.f32 %v329, %v326
  %v335 = vadd.f32 %v323, %v333
  %v336 = vadd.f32 %v324, %v334
  %v337 = vmul.f32 %v325, %v331
  %v338 = vmul.f32 %v326, %v332
  %s339 = scalar_lea.vmem %s0, 448
  %v340 = vld [vmem:[%s339] sm:$0xff]
  %v341 = vld [vmem:[%s339 + $0x8] sm:$0xff]
  %s342 = scalar_lea.vmem %s0, 1088
  %v343 = vld [vmem:[%s342] sm:$0xff]
  %v344 = vld [vmem:[%s342 + $0x8] sm:$0xff]
  %v345 = vmul.f32 %v340, %v337
  %v346 = vmul.f32 %v341, %v338
  %v347 = vadd.f32 %v335, %v345
  %v348 = vadd.f32 %v336, %v346
  %v349 = vmul.f32 %v337, %v343
  %v350 = vmul.f32 %v338, %v344
  %s351 = scalar_lea.vmem %s0, 464
  %v352 = vld [vmem:[%s351] sm:$0xff]
  %v353 = vld [vmem:[%s351 + $0x8] sm:$0xff]
  %s354 = scalar_lea.vmem %s0, 1104
  %v355 = vld [vmem:[%s354] sm:$0xff]
  %v356 = vld [vmem:[%s354 + $0x8] sm:$0xff]
  %v357 = vmul.f32 %v352, %v349
  %v358 = vmul.f32 %v353, %v350
  %v359 = vadd.f32 %v347, %v357
  %v360 = vadd.f32 %v348, %v358
  %v361 = vmul.f32 %v349, %v355
  %v362 = vmul.f32 %v350, %v356
  %s363 = scalar_lea.vmem %s0, 480
  %v364 = vld [vmem:[%s363] sm:$0xff]
  %v365 = vld [vmem:[%s363 + $0x8] sm:$0xff]
  %s366 = scalar_lea.vmem %s0, 1120
  %v367 = vld [vmem:[%s366] sm:$0xff]
  %v368 = vld [vmem:[%s366 + $0x8] sm:$0xff]
  %v369 = vmul.f32 %v364, %v361
  %v370 = vmul.f32 %v365, %v362
  %v371 = vadd.f32 %v359, %v369
  %v372 = vadd.f32 %v360, %v370
  %v373 = vmul.f32 %v361, %v367
  %v374 = vmul.f32 %v362, %v368
  %s375 = scalar_lea.vmem %s0, 496
  %v376 = vld [vmem:[%s375] sm:$0xff]
  %v377 = vld [vmem:[%s375 + $0x8] sm:$0xff]
  %s378 = scalar_lea.vmem %s0, 1136
  %v379 = vld [vmem:[%s378] sm:$0xff]
  %v380 = vld [vmem:[%s378 + $0x8] sm:$0xff]
  %v381 = vmul.f32 %v376, %v373
  %v382 = vmul.f32 %v377, %v374
  %v383 = vadd.f32 %v371, %v381
  %v384 = vadd.f32 %v372, %v382
  %v385 = vmul.f32 %v373, %v379
  %v386 = vmul.f32 %v374, %v380
  %s387 = scalar_lea.vmem %s0, 512
  %v388 = vld [vmem:[%s387] sm:$0xff]
  %v389 = vld [vmem:[%s387 + $0x8] sm:$0xff]
  %s390 = scalar_lea.vmem %s0, 1152
  %v391 = vld [vmem:[%s390] sm:$0xff]
  %v392 = vld [vmem:[%s390 + $0x8] sm:$0xff]
  %v393 = vmul.f32 %v388, %v385
  %v394 = vmul.f32 %v389, %v386
  %v395 = vadd.f32 %v383, %v393
  %v396 = vadd.f32 %v384, %v394
  %v397 = vmul.f32 %v385, %v391
  %v398 = vmul.f32 %v386, %v392
  %s399 = scalar_lea.vmem %s0, 528
  %v400 = vld [vmem:[%s399] sm:$0xff]
  %v401 = vld [vmem:[%s399 + $0x8] sm:$0xff]
  %s402 = scalar_lea.vmem %s0, 1168
  %v403 = vld [vmem:[%s402] sm:$0xff]
  %v404 = vld [vmem:[%s402 + $0x8] sm:$0xff]
  %v405 = vmul.f32 %v400, %v397
  %v406 = vmul.f32 %v401, %v398
  %v407 = vadd.f32 %v395, %v405
  %v408 = vadd.f32 %v396, %v406
  %v409 = vmul.f32 %v397, %v403
  %v410 = vmul.f32 %v398, %v404
  %s411 = scalar_lea.vmem %s0, 544
  %v412 = vld [vmem:[%s411] sm:$0xff]
  %v413 = vld [vmem:[%s411 + $0x8] sm:$0xff]
  %s414 = scalar_lea.vmem %s0, 1184
  %v415 = vld [vmem:[%s414] sm:$0xff]
  %v416 = vld [vmem:[%s414 + $0x8] sm:$0xff]
  %v417 = vmul.f32 %v412, %v409
  %v418 = vmul.f32 %v413, %v410
  %v419 = vadd.f32 %v407, %v417
  %v420 = vadd.f32 %v408, %v418
  %v421 = vmul.f32 %v409, %v415
  %v422 = vmul.f32 %v410, %v416
  %s423 = scalar_lea.vmem %s0, 560
  %v424 = vld [vmem:[%s423] sm:$0xff]
  %v425 = vld [vmem:[%s423 + $0x8] sm:$0xff]
  %s426 = scalar_lea.vmem %s0, 1200
  %v427 = vld [vmem:[%s426] sm:$0xff]
  %v428 = vld [vmem:[%s426 + $0x8] sm:$0xff]
  %v429 = vmul.f32 %v424, %v421
  %v430 = vmul.f32 %v425, %v422
  %v431 = vadd.f32 %v419, %v429
  %v432 = vadd.f32 %v420, %v430
  %v433 = vmul.f32 %v421, %v427
  %v434 = vmul.f32 %v422, %v428
  %s435 = scalar_lea.vmem %s0, 576
  %v436 = vld [vmem:[%s435] sm:$0xff]
  %v437 = vld [vmem:[%s435 + $0x8] sm:$0xff]
  %s438 = scalar_lea.vmem %s0, 1216
  %v439 = vld [vmem:[%s438] sm:$0xff]
  %v440 = vld [vmem:[%s438 + $0x8] sm:$0xff]
  %v441 = vmul.f32 %v436, %v433
  %v442 = vmul.f32 %v437, %v434
  %v443 = vadd.f32 %v431, %v441
  %v444 = vadd.f32 %v432, %v442
  %v445 = vmul.f32 %v433, %v439
  %v446 = vmul.f32 %v434, %v440
  %s447 = scalar_lea.vmem %s0, 592
  %v448 = vld [vmem:[%s447] sm:$0xff]
  %v449 = vld [vmem:[%s447 + $0x8] sm:$0xff]
  %s450 = scalar_lea.vmem %s0, 1232
  %v451 = vld [vmem:[%s450] sm:$0xff]
  %v452 = vld [vmem:[%s450 + $0x8] sm:$0xff]
  %v453 = vmul.f32 %v448, %v445
  %v454 = vmul.f32 %v449, %v446
  %v455 = vadd.f32 %v443, %v453
  %v456 = vadd.f32 %v444, %v454
  %v457 = vmul.f32 %v445, %v451
  %v458 = vmul.f32 %v446, %v452
  %s459 = scalar_lea.vmem %s0, 608
  %v460 = vld [vmem:[%s459] sm:$0xff]
  %v461 = vld [vmem:[%s459 + $0x8] sm:$0xff]
  %s462 = scalar_lea.vmem %s0, 1248
  %v463 = vld [vmem:[%s462] sm:$0xff]
  %v464 = vld [vmem:[%s462 + $0x8] sm:$0xff]
  %v465 = vmul.f32 %v460, %v457
  %v466 = vmul.f32 %v461, %v458
  %v467 = vadd.f32 %v455, %v465
  %v468 = vadd.f32 %v456, %v466
  %v469 = vmul.f32 %v457, %v463
  %v470 = vmul.f32 %v458, %v464
  %s471 = scalar_lea.vmem %s0, 624
  %v472 = vld [vmem:[%s471] sm:$0xff]
  %v473 = vld [vmem:[%s471 + $0x8] sm:$0xff]
  %v474 = vmul.f32 %v472, %v469
  %v475 = vmul.f32 %v473, %v470
  %v476 = vadd.f32 %v467, %v474
  %v477 = vadd.f32 %v468, %v475
  %478 = vst [vmem:[%s1] sm:$0xff] %v476
  %vm479 = vcmask 588800
  %480 = vst.msk [vmem:[%s1 + $0x8] sm:$0xff] %vm479, %v477
  // Predicated region
  $region6: #{differentiable_renderer_forward.3} parent=0 // pred_check
    _
  $region7: #{differentiable_renderer_forward.3} parent=0 // pred_check_branch
    %482 = sbr.rel (0) target = $region9
  $region8: #{differentiable_renderer_forward.3} parent=0 // pred_region
    _
  $region9: #{differentiable_renderer_forward.3} parent=0 // pred_fallthru
    _
  // Predicated region
  $region10: #{differentiable_renderer_forward.3} parent=0 // pred_check
    _
  $region11: #{differentiable_renderer_forward.3} parent=0 // pred_check_branch
    %484 = sbr.rel (0) target = $region13
  $region12: #{differentiable_renderer_forward.3} parent=0 // pred_region
    _
  $region13: #{differentiable_renderer_forward.3} parent=0 // pred_fallthru
    _

</llo_original>
